<compile_context>
chip_gen: v5e
topology: v5e:2x2
jax: 0.10.0
libtpu: 0.0.40
codegen_flags: <defaults>
</compile_context>

<pallas_src>
import functools
import math

import jax
import jax.numpy as jnp
from jax.experimental import pallas as pl
from jax.experimental.pallas import tpu as pltpu

LN_EPS = 1e-5                     # nn.LayerNorm default
TIME_CHUNK = 8                    # serial sub-chunk (sublane count) inside the scan
MAX_BLOCK_L = 512                 # max time rows per grid step (bounds VMEM on v7x)
OUT_TILE_ROWS = 256               # row tile for fused LN/SiLU/out_proj stage
VMEM_LIMIT = 32 * 1024 * 1024     # explicit scoped-VMEM budget (fits all generations)


def _round_up(x, m):
    return ((x + m - 1) // m) * m


def _pad_last(a, target):
    pad = target - a.shape[-1]
    if pad == 0:
        return a
    cfg = [(0, 0)] * (a.ndim - 1) + [(0, pad)]
    return jnp.pad(a, cfg)


def _softplus(x):
    xs = jnp.minimum(x, 30.0)
    return jnp.where(x > 30.0, x, jnp.log(1.0 + jnp.exp(xs)))


def _silu(x):
    return x * (1.0 / (1.0 + jnp.exp(-x)))


def _choose_block_l(L, max_block=MAX_BLOCK_L):
    """Largest multiple of TIME_CHUNK that divides L and is <= max_block."""
    best = TIME_CHUNK
    b = TIME_CHUNK
    while b <= min(L, max_block):
        if L % b == 0:
            best = b
        b += TIME_CHUNK
    return best


# ----------------------------------------------------------------------------------
# Kernel 1: selective scan.  Grid = (B, K, L // block_l), time innermost/"arbitrary",
# SSM state h carried in VMEM scratch across time blocks.
# ----------------------------------------------------------------------------------
def _selective_scan_kernel(u_ref, dt_ref, bc_ref, adb_ref, out_ref, h_ref):
    # u_ref, dt_ref : (block_l, Dp)       time on sublanes, d_inner (padded) on lanes
    # bc_ref        : (block_l, 2*n)      columns [B | C]
    # adb_ref       : (n+2, Dp)           rows 0..n-1 = A^T, row n = D, row n+1 = bias
    # out_ref       : (block_l, Dp)
    # h_ref         : VMEM (n, Dp) scratch, carried across the time grid axis
    block_l, _ = out_ref.shape
    n = bc_ref.shape[1] // 2
    tc = TIME_CHUNK
    n_chunks = block_l // tc

    A = adb_ref[0:n, :]                  # (n, Dp)
    d_row = adb_ref[n:n + 1, :]          # (1, Dp)   skip connection D
    bias_row = adb_ref[n + 1:n + 2, :]   # (1, Dp)   dt bias

    @pl.when(pl.program_id(2) == 0)
    def _():
        h_ref[...] = jnp.zeros_like(h_ref)

    def chunk_body(c, carry):
        off = pl.multiple_of(c * tc, tc)
        u_c = u_ref[pl.ds(off, tc), :]                                 # (tc, Dp)
        dt_c = _softplus(dt_ref[pl.ds(off, tc), :] + bias_row)         # (tc, Dp)
        bc = bc_ref[pl.ds(off, tc), :]                                 # (tc, 2n)
        b_c = bc[:, :n]                                                # (tc, n)
        c_c = bc[:, n:]                                                # (tc, n)

        # fully vectorised per-chunk elementwise work (EUP exp off the serial chain)
        dA_c = jnp.exp(dt_c[:, None, :] * A[None, :, :])               # (tc, n, Dp)
        dBu_c = (dt_c * u_c)[:, None, :] * b_c[:, :, None]             # (tc, n, Dp)

        # serial recurrence; per-step states stay in vregs (no VMEM round trip)
        h = h_ref[...]
        hs = []
        for t in range(tc):
            h = dA_c[t] * h + dBu_c[t]
            hs.append(h)
        h_ref[...] = h

        h_stack = jnp.stack(hs, axis=0)                                # (tc, n, Dp)
        y_c = jnp.sum(c_c[:, :, None] * h_stack, axis=1)               # (tc, Dp)
        out_ref[pl.ds(off, tc), :] = y_c + u_c * d_row
        return carry

    jax.lax.fori_loop(0, n_chunks, chunk_body, 0)


def selective_scan_pallas(u4, dt4, bc4, adb):
    """u4, dt4: (B,K,L,Dp); bc4: (B,K,L,2*d_state); adb: (K,d_state+2,Dp)."""
    bsz, k, L, dp = u4.shape
    n2 = bc4.shape[-1]
    assert L % TIME_CHUNK == 0, "pad L to a multiple of the time chunk"
    # TODO(synk): non-multiple-of-8 H*W needs wrapper-side padding + masking of the
    # trailing steps (they would otherwise corrupt the carried state of reversed scans).
    assert dp % 128 == 0, "d_inner must be lane-padded to a multiple of 128"
    block_l = _choose_block_l(L)

    seq_d_in = pl.BlockSpec((None, None, block_l, dp), lambda b, g, t: (b, g, t, 0))
    seq_n_in = pl.BlockSpec((None, None, block_l, n2), lambda b, g, t: (b, g, t, 0))
    seq_d_out = pl.BlockSpec((None, None, block_l, dp), lambda b, g, t: (b, g, t, 0))

    return pl.pallas_call(
        _selective_scan_kernel,
        out_shape=jax.ShapeDtypeStruct((bsz, k, L, dp), jnp.float32),
        grid_spec=pltpu.PrefetchScalarGridSpec(
            num_scalar_prefetch=0,
            grid=(bsz, k, L // block_l),
            in_specs=[
                seq_d_in,                                                    # u
                seq_d_in,                                                    # dt (raw)
                seq_n_in,                                                    # [B | C]
                pl.BlockSpec((None, adb.shape[1], dp), lambda b, g, t: (g, 0, 0)),
            ],
            out_specs=seq_d_out,
            scratch_shapes=[pltpu.VMEM((n2 // 2, dp), jnp.float32)],         # h carry
        ),
        compiler_params=pltpu.CompilerParams(
            dimension_semantics=("parallel", "parallel", "arbitrary"),
            vmem_limit_bytes=VMEM_LIMIT),
    )(u4, dt4, bc4, adb)


def selective_scan_reference(u4, dt4, b4, c4, a_t, d2, bias2):
    """Pure-JAX reference of the same scan (lax.scan), for validation."""
    delta = _softplus(dt4 + bias2[None, :, None, :])

    def one_seq(u, dlt, A, bseq, cseq, d_skip):
        h0 = jnp.zeros_like(A)

        def step(h, inp):
            u_t, dlt_t, b_t, c_t = inp
            dA = jnp.exp(dlt_t[None, :] * A)
            h = dA * h + (dlt_t * u_t)[None, :] * b_t[:, None]
            y_t = jnp.sum(c_t[:, None] * h, axis=0) + d_skip * u_t
            return h, y_t

        _, ys = jax.lax.scan(step, h0, (u, dlt, bseq, cseq))
        return ys

    f = jax.vmap(jax.vmap(one_seq, in_axes=(0, 0, 0, 0, 0, 0)),
                 in_axes=(0, 0, None, 0, 0, None))
    return f(u4, delta, a_t, b4, c4, d2)


# ----------------------------------------------------------------------------------
# Kernel 2: fused LayerNorm + SiLU gate + out_proj.  Fixed row tile, lane-dense
# (padded) d_inner and d_model; LN statistics use the true d_inner divisor.
# ----------------------------------------------------------------------------------
def _out_stage_kernel(y_ref, z_ref, gb_ref, w_ref, o_ref, *, d_true):
    y = y_ref[...]                                   # (tile_r, Dp), padded lanes are 0
    gamma = gb_ref[0:1, :]
    beta = gb_ref[1:2, :]
    inv_d = 1.0 / d_true
    s1 = jnp.sum(y, axis=-1, keepdims=True)          # padded lanes contribute 0
    s2 = jnp.sum(y * y, axis=-1, keepdims=True)
    mean = s1 * inv_d
    var = s2 * inv_d - mean * mean
    yn = (y - mean) * jax.lax.rsqrt(var + LN_EPS) * gamma + beta   # padded lanes -> 0
    h = yn * _silu(z_ref[...])
    o_ref[...] = jnp.dot(h, w_ref[...], preferred_element_type=jnp.float32)


def out_stage_pallas(yr, zr, gb, w_out, *, d_true):
    r, dp = yr.shape
    np_out = w_out.shape[1]
    assert dp % 128 == 0 and np_out % 128 == 0
    assert r % 8 == 0
    tile_r = min(OUT_TILE_ROWS, r)
    return pl.pallas_call(
        functools.partial(_out_stage_kernel, d_true=d_true),
        out_shape=jax.ShapeDtypeStruct((r, np_out), jnp.float32),
        grid_spec=pltpu.PrefetchScalarGridSpec(
            num_scalar_prefetch=0,
            grid=(pl.cdiv(r, tile_r),),
            in_specs=[
                pl.BlockSpec((tile_r, dp), lambda i: (i, 0)),
                pl.BlockSpec((tile_r, dp), lambda i: (i, 0)),
                pl.BlockSpec((2, dp), lambda i: (0, 0)),          # packed gamma/beta
                pl.BlockSpec((dp, np_out), lambda i: (0, 0)),
            ],
            out_specs=pl.BlockSpec((tile_r, np_out), lambda i: (i, 0)),
        ),
        compiler_params=pltpu.CompilerParams(
            dimension_semantics=("parallel",),
            vmem_limit_bytes=VMEM_LIMIT),
    )(yr, zr, gb, w_out)


def out_stage_reference(yr, zr, gamma, beta, w_out):
    mean = jnp.mean(yr, axis=-1, keepdims=True)
    var = jnp.mean(jnp.square(yr - mean), axis=-1, keepdims=True)
    yn = (yr - mean) * jax.lax.rsqrt(var + LN_EPS) * gamma[None, :] + beta[None, :]
    h = yn * _silu(zr)
    return jnp.dot(h, w_out, precision=jax.lax.Precision.HIGHEST)


# ----------------------------------------------------------------------------------
# Full SS2D forward (wrapper)
# ----------------------------------------------------------------------------------
def ss2d_forward(params, x, *, use_pallas=True):
    bsz, H, W, d_model = x.shape
    L = H * W
    K = 4
    d_inner = params["Ds"].shape[0] // K
    d_state = params["A_logs"].shape[1]
    dt_rank = params["dt_projs_weight"].shape[2]

    # TODO(synk): in_proj / depthwise conv / x_proj / dt_proj einsums and the
    # directional flip/transpose plumbing are dense XLA ops left outside Pallas.
    xz = jnp.dot(x, params["w_in"])                       # (B,H,W,2*d_inner)
    xp, z = jnp.split(xz, 2, axis=-1)

    # depthwise 3x3 conv + SiLU in NHWC so the scan inputs stay channels-last /
    # time-major with no extra transposes afterwards
    xc = jax.lax.conv_general_dilated(
        xp, params["w_conv"], window_strides=(1, 1), padding=((1, 1), (1, 1)),
        dimension_numbers=("NHWC", "HWIO", "NHWC"),
        feature_group_count=d_inner) + params["b_conv"]
    xc = _silu(xc)                                        # (B,H,W,d_inner)

    # 4 directional sequences, emitted directly time-major: (B,K,L,d_inner)
    x_row = xc.reshape(bsz, L, d_inner)                                   # row-major
    x_col = jnp.transpose(xc, (0, 2, 1, 3)).reshape(bsz, L, d_inner)      # col-major
    x_hwwh = jnp.stack([x_row, x_col], axis=1)                            # (B,2,L,d)
    xs = jnp.concatenate([x_hwwh, jnp.flip(x_hwwh, axis=2)], axis=1)      # (B,4,L,d)

    x_dbl = jnp.einsum("bkld,kcd->bklc", xs, params["x_proj_weight"])
    dts_r = x_dbl[..., :dt_rank]
    bc4 = x_dbl[..., dt_rank:].astype(jnp.float32)        # (B,K,L,2*d_state) = [B|C]
    dt4 = jnp.einsum("bklr,kdr->bkld", dts_r,
                     params["dt_projs_weight"]).astype(jnp.float32)
    u4 = xs.astype(jnp.float32)                           # (B,K,L,d_inner)

    a_t = (-jnp.exp(params["A_logs"].astype(jnp.float32))
           ).reshape(K, d_inner, d_state).transpose(0, 2, 1)   # (K,d_state,d_inner)
    d2 = params["Ds"].astype(jnp.float32).reshape(K, d_inner)
    bias2 = params["dt_projs_bias"].astype(jnp.float32).reshape(K, d_inner)

    if use_pallas:
        dp = _round_up(d_inner, 128)                       # lane-dense d_inner
        adb = jnp.concatenate(
            [_pad_last(a_t, dp),
             _pad_last(d2, dp)[:, None, :],
             _pad_last(bias2, dp)[:, None, :]], axis=1)    # (K, d_state+2, dp)
        out_y = selective_scan_pallas(_pad_last(u4, dp), _pad_last(dt4, dp), bc4, adb)
        dch = dp                                           # padded lanes carry zeros
    else:
        b4 = bc4[..., :d_state]
        c4 = bc4[..., d_state:]
        out_y = selective_scan_reference(u4, dt4, b4, c4, a_t, d2, bias2)
        dch = d_inner

    # combine the 4 directional outputs (time-major, same math as forward_core)
    y1 = out_y[:, 0]
    y2 = jnp.flip(out_y[:, 2], axis=1)
    wh_y = jnp.transpose(out_y[:, 1].reshape(bsz, W, H, dch),
                         (0, 2, 1, 3)).reshape(bsz, L, dch)
    invwh_y = jnp.transpose(jnp.flip(out_y[:, 3], axis=1).reshape(bsz, W, H, dch),
                            (0, 2, 1, 3)).reshape(bsz, L, dch)
    y = y1 + y2 + wh_y + invwh_y                           # (B,L,dch)

    yr = y.reshape(bsz * L, dch)
    zr = z.reshape(bsz * L, d_inner).astype(jnp.float32)

    if use_pallas:
        np_out = _round_up(d_model, 128)                   # lane-dense output columns
        gb = jnp.stack([_pad_last(params["ln_g"], dp),
                        _pad_last(params["ln_b"], dp)], axis=0)        # (2, dp)
        w_out_p = jnp.pad(params["w_out"],
                          ((0, dp - d_inner), (0, np_out - d_model)))  # (dp, np_out)
        out = out_stage_pallas(yr, _pad_last(zr, dp), gb, w_out_p,
                               d_true=d_inner)[:, :d_model]
    else:
        out = out_stage_reference(yr, zr, params["ln_g"], params["ln_b"],
                                  params["w_out"])
    return out.reshape(bsz, H, W, d_model)


# ----------------------------------------------------------------------------------
# Deterministic synthetic parameter init (same shapes / init logic as the module)
# ----------------------------------------------------------------------------------
def init_params(key, d_model, d_state=16, d_conv=3, expand=2,
                dt_min=0.001, dt_max=0.1, dt_init_floor=1e-4):
    d_inner = expand * d_model
    dt_rank = math.ceil(d_model / 16)
    K = 4
    ks = jax.random.split(key, 8)

    def uni(k, shape, bound):
        return jax.random.uniform(k, shape, jnp.float32, -bound, bound)

    w_in = uni(ks[0], (d_model, 2 * d_inner), 1.0 / math.sqrt(d_model))
    w_conv = uni(ks[1], (d_conv, d_conv, 1, d_inner), 1.0 / math.sqrt(d_conv * d_conv))
    b_conv = uni(ks[2], (d_inner,), 1.0 / math.sqrt(d_conv * d_conv))
    x_proj_weight = uni(ks[3], (K, dt_rank + 2 * d_state, d_inner),
                        1.0 / math.sqrt(d_inner))
    dt_projs_weight = uni(ks[4], (K, d_inner, dt_rank), dt_rank ** -0.5)

    r = jax.random.uniform(ks[5], (K, d_inner), jnp.float32)
    dt = jnp.exp(r * (math.log(dt_max) - math.log(dt_min)) + math.log(dt_min))
    dt = jnp.maximum(dt, dt_init_floor)
    dt_projs_bias = dt + jnp.log(-jnp.expm1(-dt))          # inverse-softplus init

    A_logs = jnp.tile(jnp.log(jnp.arange(1, d_state + 1, dtype=jnp.float32))[None, :],
                      (K * d_inner, 1))                    # (K*d_inner, d_state)
    Ds = jnp.ones((K * d_inner,), jnp.float32)
    w_out = uni(ks[6], (d_inner, d_model), 1.0 / math.sqrt(d_inner))

    return {
        "w_in": w_in, "w_conv": w_conv, "b_conv": b_conv,
        "x_proj_weight": x_proj_weight,
        "dt_projs_weight": dt_projs_weight, "dt_projs_bias": dt_projs_bias,
        "A_logs": A_logs, "Ds": Ds,
        "ln_g": jnp.ones((d_inner,), jnp.float32),
        "ln_b": jnp.zeros((d_inner,), jnp.float32),
        "w_out": w_out,
    }


if __name__ == "__main__":
    d_model, d_state, d_conv, expand = 32, 16, 3, 2   # d_inner=64, dt_rank=2
    B, H, W = 2, 8, 8                                 # L = 64

    key = jax.random.PRNGKey(0)
    kp, kx = jax.random.split(key)
    params = init_params(kp, d_model, d_state, d_conv, expand)
    x = jax.random.normal(kx, (B, H, W, d_model), jnp.float32)

    fwd_pallas = jax.jit(functools.partial(ss2d_forward, use_pallas=True))
    fwd_ref = jax.jit(functools.partial(ss2d_forward, use_pallas=False))

    out = jax.block_until_ready(fwd_pallas(params, x))
    ref = jax.block_until_ready(fwd_ref(params, x))

    assert out.shape == (B, H, W, d_model)
    assert jnp.allclose(out, ref, atol=2e-3, rtol=2e-3), "mismatch vs pure-JAX reference"

    print("KERNEL_OK")
</pallas_src>

<mosaic_0001>
module attributes {stable_mosaic.version = 11 : i64} {
  func.func @_selective_scan_kernel(%arg0: i32, %arg1: i32, %arg2: i32, %arg3: memref<1x1x64x128xf32, #tpu.memory_space<vmem>>, %arg4: memref<1x1x64x128xf32, #tpu.memory_space<vmem>>, %arg5: memref<1x1x64x32xf32, #tpu.memory_space<vmem>>, %arg6: memref<1x18x128xf32, #tpu.memory_space<vmem>>, %arg7: memref<1x1x64x128xf32, #tpu.memory_space<vmem>>, %arg8: memref<16x128xf32, #tpu.memory_space<vmem>>) attributes {dimension_semantics = [#tpu.dimension_semantics<parallel>, #tpu.dimension_semantics<parallel>, #tpu.dimension_semantics<arbitrary>], iteration_bounds = array<i64: 2, 4, 1>, scalar_prefetch = 0 : i64, scratch_operands = 1 : i64, tpu.core_type = #tpu.core_type<tc>, window_params = [{transform_indices = @transform_0, window_bounds = array<i64: 1, 1, 64, 128>}, {transform_indices = @transform_1, window_bounds = array<i64: 1, 1, 64, 128>}, {transform_indices = @transform_2, window_bounds = array<i64: 1, 1, 64, 32>}, {transform_indices = @transform_3, window_bounds = array<i64: 1, 18, 128>}, {transform_indices = @transform_4, window_bounds = array<i64: 1, 1, 64, 128>}]} {
    %c0 = arith.constant 0 : index
    %c0_0 = arith.constant 0 : index
    %c0_1 = arith.constant 0 : index
    %0 = vector.load %arg6[%c0, %c0_0, %c0_1] : memref<1x18x128xf32, #tpu.memory_space<vmem>>, vector<1x16x128xf32>
    %1 = vector.shape_cast %0 : vector<1x16x128xf32> to vector<16x128xf32>
    %c0_2 = arith.constant 0 : index
    %c16 = arith.constant 16 : index
    %c0_3 = arith.constant 0 : index
    %2 = vector.load %arg6[%c0_2, %c16, %c0_3] : memref<1x18x128xf32, #tpu.memory_space<vmem>>, vector<1x1x128xf32>
    %3 = vector.shape_cast %2 : vector<1x1x128xf32> to vector<1x128xf32>
    %c0_4 = arith.constant 0 : index
    %c17 = arith.constant 17 : index
    %c0_5 = arith.constant 0 : index
    %4 = vector.load %arg6[%c0_4, %c17, %c0_5] : memref<1x18x128xf32, #tpu.memory_space<vmem>>, vector<1x1x128xf32>
    %5 = vector.shape_cast %4 : vector<1x1x128xf32> to vector<1x128xf32>
    %c0_i32 = arith.constant 0 : i32
    %6 = arith.cmpi eq, %arg2, %c0_i32 : i32
    %7 = arith.extui %6 : i1 to i32
    %c0_i32_6 = arith.constant 0 : i32
    %8 = arith.cmpi ne, %7, %c0_i32_6 : i32
    scf.if %8 {
      %cst = arith.constant 0.000000e+00 : f32
      %10 = vector.broadcast %cst : f32 to vector<16x128xf32>
      %c0_9 = arith.constant 0 : index
      %c0_10 = arith.constant 0 : index
      %11 = vector.load %arg8[%c0_9, %c0_10] : memref<16x128xf32, #tpu.memory_space<vmem>>, vector<16x128xf32>
      tpu.vector_store %arg8[%c0_9, %c0_10], %10 {strides = array<i32>} : memref<16x128xf32, #tpu.memory_space<vmem>>, vector<16x128xf32>,
    } else {
    }
    %c0_i32_7 = arith.constant 0 : i32
    %c8_i32 = arith.constant 8 : i32
    %9 = arith.addi %c0_i32_7, %c8_i32 : i32
    %c1_i32 = arith.constant 1 : i32
    scf.for %arg9 = %c0_i32_7 to %9 step %c1_i32  : i32 {
      %c8_i32_9 = arith.constant 8 : i32
      %10 = arith.muli %arg9, %c8_i32_9 : i32
      %11 = tpu.assume_multiple %10, 8 : i32
      %c0_10 = arith.constant 0 : index
      %c0_11 = arith.constant 0 : index
      %12 = arith.index_cast %11 : i32 to index
      %c0_12 = arith.constant 0 : index
      %13 = vector.load %arg3[%c0_10, %c0_11, %12, %c0_12] : memref<1x1x64x128xf32, #tpu.memory_space<vmem>>, vector<1x1x8x128xf32>
      %14 = vector.shape_cast %13 : vector<1x1x8x128xf32> to vector<8x128xf32>
      %c0_13 = arith.constant 0 : index
      %c0_14 = arith.constant 0 : index
      %15 = arith.index_cast %11 : i32 to index
      %c0_15 = arith.constant 0 : index
      %16 = vector.load %arg4[%c0_13, %c0_14, %15, %c0_15] : memref<1x1x64x128xf32, #tpu.memory_space<vmem>>, vector<1x1x8x128xf32>
      %17 = vector.shape_cast %16 : vector<1x1x8x128xf32> to vector<8x128xf32>
      %18 = vector.broadcast %5 : vector<1x128xf32> to vector<8x128xf32>
      %19 = arith.addf %17, %18 : vector<8x128xf32>
      %cst = arith.constant 3.000000e+01 : f32
      %20 = vector.broadcast %cst : f32 to vector<8x128xf32>
      %21 = arith.minimumf %19, %20 : vector<8x128xf32>
      %cst_16 = arith.constant 3.000000e+01 : f32
      %22 = vector.broadcast %cst_16 : f32 to vector<8x128xf32>
      %23 = arith.cmpf ogt, %19, %22 : vector<8x128xf32>
      %24 = math.exp %21 : vector<8x128xf32>
      %cst_17 = arith.constant 1.000000e+00 : f32
      %25 = vector.broadcast %cst_17 : f32 to vector<8x128xf32>
      %26 = arith.addf %25, %24 : vector<8x128xf32>
      %27 = math.log %26 : vector<8x128xf32>
      %28 = arith.select %23, %19, %27 : vector<8x128xi1>, vector<8x128xf32>
      %c0_18 = arith.constant 0 : index
      %c0_19 = arith.constant 0 : index
      %29 = arith.index_cast %11 : i32 to index
      %c0_20 = arith.constant 0 : index
      %30 = vector.load %arg5[%c0_18, %c0_19, %29, %c0_20] : memref<1x1x64x32xf32, #tpu.memory_space<vmem>>, vector<1x1x8x32xf32>
      %31 = vector.shape_cast %30 : vector<1x1x8x32xf32> to vector<8x32xf32>
      %32 = vector.extract_strided_slice %31 {offsets = [0, 0], sizes = [8, 16], strides = [1, 1]} : vector<8x32xf32> to vector<8x16xf32>
      %33 = vector.extract_strided_slice %31 {offsets = [0, 16], sizes = [8, 16], strides = [1, 1]} : vector<8x32xf32> to vector<8x16xf32>
      %34 = vector.shape_cast %28 : vector<8x128xf32> to vector<8x1x128xf32>
      %35 = vector.shape_cast %1 : vector<16x128xf32> to vector<1x16x128xf32>
      %36 = vector.broadcast %34 : vector<8x1x128xf32> to vector<8x16x128xf32>
      %37 = vector.broadcast %35 : vector<1x16x128xf32> to vector<8x16x128xf32>
      %38 = arith.mulf %36, %37 : vector<8x16x128xf32>
      %39 = math.exp %38 : vector<8x16x128xf32>
      %40 = arith.mulf %28, %14 : vector<8x128xf32>
      %41 = vector.shape_cast %40 : vector<8x128xf32> to vector<8x1x128xf32>
      %42 = vector.shape_cast %32 : vector<8x16xf32> to vector<8x16x1xf32>
      %43 = vector.broadcast %41 : vector<8x1x128xf32> to vector<8x16x128xf32>
      %44 = vector.broadcast %42 : vector<8x16x1xf32> to vector<8x16x128xf32>
      %45 = arith.mulf %43, %44 : vector<8x16x128xf32>
      %c0_21 = arith.constant 0 : index
      %c0_22 = arith.constant 0 : index
      %46 = vector.load %arg8[%c0_21, %c0_22] : memref<16x128xf32, #tpu.memory_space<vmem>>, vector<16x128xf32>
      %47 = vector.extract_strided_slice %39 {offsets = [0, 0, 0], sizes = [1, 16, 128], strides = [1, 1, 1]} : vector<8x16x128xf32> to vector<1x16x128xf32>
      %48 = vector.shape_cast %47 : vector<1x16x128xf32> to vector<16x128xf32>
      %49 = arith.mulf %48, %46 : vector<16x128xf32>
      %50 = vector.extract_strided_slice %45 {offsets = [0, 0, 0], sizes = [1, 16, 128], strides = [1, 1, 1]} : vector<8x16x128xf32> to vector<1x16x128xf32>
      %51 = vector.shape_cast %50 : vector<1x16x128xf32> to vector<16x128xf32>
      %52 = arith.addf %49, %51 : vector<16x128xf32>
      %53 = vector.extract_strided_slice %39 {offsets = [1, 0, 0], sizes = [1, 16, 128], strides = [1, 1, 1]} : vector<8x16x128xf32> to vector<1x16x128xf32>
      %54 = vector.shape_cast %53 : vector<1x16x128xf32> to vector<16x128xf32>
      %55 = arith.mulf %54, %52 : vector<16x128xf32>
      %56 = vector.extract_strided_slice %45 {offsets = [1, 0, 0], sizes = [1, 16, 128], strides = [1, 1, 1]} : vector<8x16x128xf32> to vector<1x16x128xf32>
      %57 = vector.shape_cast %56 : vector<1x16x128xf32> to vector<16x128xf32>
      %58 = arith.addf %55, %57 : vector<16x128xf32>
      %59 = vector.extract_strided_slice %39 {offsets = [2, 0, 0], sizes = [1, 16, 128], strides = [1, 1, 1]} : vector<8x16x128xf32> to vector<1x16x128xf32>
      %60 = vector.shape_cast %59 : vector<1x16x128xf32> to vector<16x128xf32>
      %61 = arith.mulf %60, %58 : vector<16x128xf32>
      %62 = vector.extract_strided_slice %45 {offsets = [2, 0, 0], sizes = [1, 16, 128], strides = [1, 1, 1]} : vector<8x16x128xf32> to vector<1x16x128xf32>
      %63 = vector.shape_cast %62 : vector<1x16x128xf32> to vector<16x128xf32>
      %64 = arith.addf %61, %63 : vector<16x128xf32>
      %65 = vector.extract_strided_slice %39 {offsets = [3, 0, 0], sizes = [1, 16, 128], strides = [1, 1, 1]} : vector<8x16x128xf32> to vector<1x16x128xf32>
      %66 = vector.shape_cast %65 : vector<1x16x128xf32> to vector<16x128xf32>
      %67 = arith.mulf %66, %64 : vector<16x128xf32>
      %68 = vector.extract_strided_slice %45 {offsets = [3, 0, 0], sizes = [1, 16, 128], strides = [1, 1, 1]} : vector<8x16x128xf32> to vector<1x16x128xf32>
      %69 = vector.shape_cast %68 : vector<1x16x128xf32> to vector<16x128xf32>
      %70 = arith.addf %67, %69 : vector<16x128xf32>
      %71 = vector.extract_strided_slice %39 {offsets = [4, 0, 0], sizes = [1, 16, 128], strides = [1, 1, 1]} : vector<8x16x128xf32> to vector<1x16x128xf32>
      %72 = vector.shape_cast %71 : vector<1x16x128xf32> to vector<16x128xf32>
      %73 = arith.mulf %72, %70 : vector<16x128xf32>
      %74 = vector.extract_strided_slice %45 {offsets = [4, 0, 0], sizes = [1, 16, 128], strides = [1, 1, 1]} : vector<8x16x128xf32> to vector<1x16x128xf32>
      %75 = vector.shape_cast %74 : vector<1x16x128xf32> to vector<16x128xf32>
      %76 = arith.addf %73, %75 : vector<16x128xf32>
      %77 = vector.extract_strided_slice %39 {offsets = [5, 0, 0], sizes = [1, 16, 128], strides = [1, 1, 1]} : vector<8x16x128xf32> to vector<1x16x128xf32>
      %78 = vector.shape_cast %77 : vector<1x16x128xf32> to vector<16x128xf32>
      %79 = arith.mulf %78, %76 : vector<16x128xf32>
      %80 = vector.extract_strided_slice %45 {offsets = [5, 0, 0], sizes = [1, 16, 128], strides = [1, 1, 1]} : vector<8x16x128xf32> to vector<1x16x128xf32>
      %81 = vector.shape_cast %80 : vector<1x16x128xf32> to vector<16x128xf32>
      %82 = arith.addf %79, %81 : vector<16x128xf32>
      %83 = vector.extract_strided_slice %39 {offsets = [6, 0, 0], sizes = [1, 16, 128], strides = [1, 1, 1]} : vector<8x16x128xf32> to vector<1x16x128xf32>
      %84 = vector.shape_cast %83 : vector<1x16x128xf32> to vector<16x128xf32>
      %85 = arith.mulf %84, %82 : vector<16x128xf32>
      %86 = vector.extract_strided_slice %45 {offsets = [6, 0, 0], sizes = [1, 16, 128], strides = [1, 1, 1]} : vector<8x16x128xf32> to vector<1x16x128xf32>
      %87 = vector.shape_cast %86 : vector<1x16x128xf32> to vector<16x128xf32>
      %88 = arith.addf %85, %87 : vector<16x128xf32>
      %89 = vector.extract_strided_slice %39 {offsets = [7, 0, 0], sizes = [1, 16, 128], strides = [1, 1, 1]} : vector<8x16x128xf32> to vector<1x16x128xf32>
      %90 = vector.shape_cast %89 : vector<1x16x128xf32> to vector<16x128xf32>
      %91 = arith.mulf %90, %88 : vector<16x128xf32>
      %92 = vector.extract_strided_slice %45 {offsets = [7, 0, 0], sizes = [1, 16, 128], strides = [1, 1, 1]} : vector<8x16x128xf32> to vector<1x16x128xf32>
      %93 = vector.shape_cast %92 : vector<1x16x128xf32> to vector<16x128xf32>
      %94 = arith.addf %91, %93 : vector<16x128xf32>
      %c0_23 = arith.constant 0 : index
      %c0_24 = arith.constant 0 : index
      %95 = vector.load %arg8[%c0_23, %c0_24] : memref<16x128xf32, #tpu.memory_space<vmem>>, vector<16x128xf32>
      tpu.vector_store %arg8[%c0_23, %c0_24], %94 {strides = array<i32>} : memref<16x128xf32, #tpu.memory_space<vmem>>, vector<16x128xf32>,
      %96 = vector.shape_cast %52 : vector<16x128xf32> to vector<1x16x128xf32>
      %97 = vector.shape_cast %58 : vector<16x128xf32> to vector<1x16x128xf32>
      %98 = vector.shape_cast %64 : vector<16x128xf32> to vector<1x16x128xf32>
      %99 = vector.shape_cast %70 : vector<16x128xf32> to vector<1x16x128xf32>
      %100 = vector.shape_cast %76 : vector<16x128xf32> to vector<1x16x128xf32>
      %101 = vector.shape_cast %82 : vector<16x128xf32> to vector<1x16x128xf32>
      %102 = vector.shape_cast %88 : vector<16x128xf32> to vector<1x16x128xf32>
      %103 = vector.shape_cast %94 : vector<16x128xf32> to vector<1x16x128xf32>
      %104 = tpu.concatenate %96, %97, %98, %99, %100, %101, %102, %103 in 0 : vector<1x16x128xf32>, vector<1x16x128xf32>, vector<1x16x128xf32>, vector<1x16x128xf32>, vector<1x16x128xf32>, vector<1x16x128xf32>, vector<1x16x128xf32>, vector<1x16x128xf32> -> vector<8x16x128xf32>
      %105 = vector.shape_cast %33 : vector<8x16xf32> to vector<8x16x1xf32>
      %106 = vector.broadcast %105 : vector<8x16x1xf32> to vector<8x16x128xf32>
      %107 = arith.mulf %106, %104 : vector<8x16x128xf32>
      %cst_25 = arith.constant dense<0.000000e+00> : vector<8x128xf32>
      %108 = vector.multi_reduction <add>, %107, %cst_25 [1] : vector<8x16x128xf32> to vector<8x128xf32>
      %109 = vector.broadcast %3 : vector<1x128xf32> to vector<8x128xf32>
      %110 = arith.mulf %14, %109 : vector<8x128xf32>
      %111 = arith.addf %108, %110 : vector<8x128xf32>
      %c0_26 = arith.constant 0 : index
      %c0_27 = arith.constant 0 : index
      %112 = arith.index_cast %11 : i32 to index
      %c0_28 = arith.constant 0 : index
      %113 = vector.load %arg7[%c0_26, %c0_27, %112, %c0_28] : memref<1x1x64x128xf32, #tpu.memory_space<vmem>>, vector<1x1x8x128xf32>
      %114 = vector.shape_cast %113 : vector<1x1x8x128xf32> to vector<8x128xf32>
      %115 = vector.shape_cast %111 : vector<8x128xf32> to vector<1x1x8x128xf32>
      tpu.vector_store %arg7[%c0_26, %c0_27, %112, %c0_28], %115 {strides = array<i32>} : memref<1x1x64x128xf32, #tpu.memory_space<vmem>>, vector<1x1x8x128xf32>,
    }
    %c8_i32_8 = arith.constant 8 : i32
    return
  }
  func.func @transform_0(%arg0: i32, %arg1: i32, %arg2: i32) -> (i32, i32, i32, i32) {
    %c0_i32 = arith.constant 0 : i32
    %c0_i32_0 = arith.constant 0 : i32
    return %arg0, %arg1, %arg2, %c0_i32 : i32, i32, i32, i32
  }
  func.func @transform_1(%arg0: i32, %arg1: i32, %arg2: i32) -> (i32, i32, i32, i32) {
    %c0_i32 = arith.constant 0 : i32
    %c0_i32_0 = arith.constant 0 : i32
    return %arg0, %arg1, %arg2, %c0_i32 : i32, i32, i32, i32
  }
  func.func @transform_2(%arg0: i32, %arg1: i32, %arg2: i32) -> (i32, i32, i32, i32) {
    %c0_i32 = arith.constant 0 : i32
    %c0_i32_0 = arith.constant 0 : i32
    return %arg0, %arg1, %arg2, %c0_i32 : i32, i32, i32, i32
  }
  func.func @transform_3(%arg0: i32, %arg1: i32, %arg2: i32) -> (i32, i32, i32) {
    %c0_i32 = arith.constant 0 : i32
    %c0_i32_0 = arith.constant 0 : i32
    %c0_i32_1 = arith.constant 0 : i32
    return %arg1, %c0_i32, %c0_i32_0 : i32, i32, i32
  }
  func.func @transform_4(%arg0: i32, %arg1: i32, %arg2: i32) -> (i32, i32, i32, i32) {
    %c0_i32 = arith.constant 0 : i32
    %c0_i32_0 = arith.constant 0 : i32
    return %arg0, %arg1, %arg2, %c0_i32 : i32, i32, i32, i32
  }
}

module attributes {stable_mosaic.version = 11 : i64} {
  func.func @_out_stage_kernel(%arg0: i32, %arg1: memref<128x128xf32, #tpu.memory_space<vmem>>, %arg2: memref<128x128xf32, #tpu.memory_space<vmem>>, %arg3: memref<2x128xf32, #tpu.memory_space<vmem>>, %arg4: memref<128x128xf32, #tpu.memory_space<vmem>>, %arg5: memref<128x128xf32, #tpu.memory_space<vmem>>) attributes {dimension_semantics = [#tpu.dimension_semantics<parallel>], iteration_bounds = array<i64: 1>, scalar_prefetch = 0 : i64, scratch_operands = 0 : i64, tpu.core_type = #tpu.core_type<tc>, window_params = [{transform_indices = @transform_0, window_bounds = array<i64: 128, 128>}, {transform_indices = @transform_1, window_bounds = array<i64: 128, 128>}, {pipeline_mode = #tpu.pipeline_mode<synchronous>, transform_indices = @transform_2, window_bounds = array<i64: 2, 128>}, {pipeline_mode = #tpu.pipeline_mode<synchronous>, transform_indices = @transform_3, window_bounds = array<i64: 128, 128>}, {transform_indices = @transform_4, window_bounds = array<i64: 128, 128>}]} {
    %c0 = arith.constant 0 : index
    %c0_0 = arith.constant 0 : index
    %0 = vector.load %arg1[%c0, %c0_0] : memref<128x128xf32, #tpu.memory_space<vmem>>, vector<128x128xf32>
    %c0_1 = arith.constant 0 : index
    %c0_2 = arith.constant 0 : index
    %1 = vector.load %arg3[%c0_1, %c0_2] : memref<2x128xf32, #tpu.memory_space<vmem>>, vector<1x128xf32>
    %c1 = arith.constant 1 : index
    %c0_3 = arith.constant 0 : index
    %2 = vector.load %arg3[%c1, %c0_3] : memref<2x128xf32, #tpu.memory_space<vmem>>, vector<1x128xf32>
    %cst = arith.constant dense<0.000000e+00> : vector<128xf32>
    %3 = vector.multi_reduction <add>, %0, %cst [1] : vector<128x128xf32> to vector<128xf32>
    %4 = vector.shape_cast %3 : vector<128xf32> to vector<128x1xf32>
    %5 = arith.mulf %0, %0 : vector<128x128xf32>
    %cst_4 = arith.constant dense<0.000000e+00> : vector<128xf32>
    %6 = vector.multi_reduction <add>, %5, %cst_4 [1] : vector<128x128xf32> to vector<128xf32>
    %7 = vector.shape_cast %6 : vector<128xf32> to vector<128x1xf32>
    %cst_5 = arith.constant 1.562500e-02 : f32
    %8 = vector.broadcast %cst_5 : f32 to vector<128x1xf32>
    %9 = arith.mulf %4, %8 : vector<128x1xf32>
    %cst_6 = arith.constant 1.562500e-02 : f32
    %10 = vector.broadcast %cst_6 : f32 to vector<128x1xf32>
    %11 = arith.mulf %7, %10 : vector<128x1xf32>
    %12 = arith.mulf %9, %9 : vector<128x1xf32>
    %13 = arith.subf %11, %12 : vector<128x1xf32>
    %14 = vector.broadcast %9 : vector<128x1xf32> to vector<128x128xf32>
    %15 = arith.subf %0, %14 : vector<128x128xf32>
    %cst_7 = arith.constant 9.99999974E-6 : f32
    %16 = vector.broadcast %cst_7 : f32 to vector<128x1xf32>
    %17 = arith.addf %13, %16 : vector<128x1xf32>
    %18 = math.rsqrt %17 : vector<128x1xf32>
    %19 = vector.broadcast %18 : vector<128x1xf32> to vector<128x128xf32>
    %20 = arith.mulf %15, %19 : vector<128x128xf32>
    %21 = vector.broadcast %1 : vector<1x128xf32> to vector<128x128xf32>
    %22 = arith.mulf %20, %21 : vector<128x128xf32>
    %23 = vector.broadcast %2 : vector<1x128xf32> to vector<128x128xf32>
    %24 = arith.addf %22, %23 : vector<128x128xf32>
    %c0_8 = arith.constant 0 : index
    %c0_9 = arith.constant 0 : index
    %25 = vector.load %arg2[%c0_8, %c0_9] : memref<128x128xf32, #tpu.memory_space<vmem>>, vector<128x128xf32>
    %cst_10 = arith.constant 0.000000e+00 : f32
    %26 = vector.broadcast %cst_10 : f32 to vector<128x128xf32>
    %27 = arith.subf %26, %25 : vector<128x128xf32>
    %28 = math.exp %27 : vector<128x128xf32>
    %cst_11 = arith.constant 1.000000e+00 : f32
    %29 = vector.broadcast %cst_11 : f32 to vector<128x128xf32>
    %30 = arith.addf %29, %28 : vector<128x128xf32>
    %cst_12 = arith.constant 1.000000e+00 : f32
    %31 = vector.broadcast %cst_12 : f32 to vector<128x128xf32>
    %32 = arith.divf %31, %30 : vector<128x128xf32>
    %33 = arith.mulf %25, %32 : vector<128x128xf32>
    %34 = arith.mulf %24, %33 : vector<128x128xf32>
    %c0_13 = arith.constant 0 : index
    %c0_14 = arith.constant 0 : index
    %35 = vector.load %arg4[%c0_13, %c0_14] : memref<128x128xf32, #tpu.memory_space<vmem>>, vector<128x128xf32>
    %cst_15 = arith.constant dense<0.000000e+00> : vector<128x128xf32>
    %36 = tpu.matmul %34, %35, %cst_15 {dimension_numbers = #tpu.dot_dimension_numbers<[1], [0], [0], [1], [0, 0, 1, 1], [], []>} : vector<128x128xf32>, vector<128x128xf32>, vector<128x128xf32> -> vector<128x128xf32>
    %c0_16 = arith.constant 0 : index
    %c0_17 = arith.constant 0 : index
    %37 = vector.load %arg5[%c0_16, %c0_17] : memref<128x128xf32, #tpu.memory_space<vmem>>, vector<128x128xf32>
    tpu.vector_store %arg5[%c0_16, %c0_17], %36 {strides = array<i32>} : memref<128x128xf32, #tpu.memory_space<vmem>>, vector<128x128xf32>,
    return
  }
  func.func @transform_0(%arg0: i32) -> (i32, i32) {
    %c0_i32 = arith.constant 0 : i32
    %c0_i32_0 = arith.constant 0 : i32
    return %arg0, %c0_i32 : i32, i32
  }
  func.func @transform_1(%arg0: i32) -> (i32, i32) {
    %c0_i32 = arith.constant 0 : i32
    %c0_i32_0 = arith.constant 0 : i32
    return %arg0, %c0_i32 : i32, i32
  }
  func.func @transform_2(%arg0: i32) -> (i32, i32) {
    %c0_i32 = arith.constant 0 : i32
    %c0_i32_0 = arith.constant 0 : i32
    %c0_i32_1 = arith.constant 0 : i32
    return %c0_i32, %c0_i32_0 : i32, i32
  }
  func.func @transform_3(%arg0: i32) -> (i32, i32) {
    %c0_i32 = arith.constant 0 : i32
    %c0_i32_0 = arith.constant 0 : i32
    %c0_i32_1 = arith.constant 0 : i32
    return %c0_i32, %c0_i32_0 : i32, i32
  }
  func.func @transform_4(%arg0: i32) -> (i32, i32) {
    %c0_i32 = arith.constant 0 : i32
    %c0_i32_0 = arith.constant 0 : i32
    return %arg0, %c0_i32 : i32, i32
  }
}

</mosaic_0001>

<llo_original>
// kernel: split.0
$region0: #{split.0}
  #allocation0 [shape = 'u32[2048]{0}', space=vmem, size = 0x2000, scoped, tag = 'scoped memory for split.0']
  #allocation1 [shape = 'u32[2048]{0}', space=vmem, size = 0x2000, scoped, tag = 'scoped memory for split.0']
  #allocation2 [shape = 'u32[2048]{0}', space=vmem, size = 0x2000, scoped, tag = 'scoped memory for split.0']
  #allocation3 [shape = 'u32[2048]{0}', space=vmem, size = 0x2000, scoped, tag = 'scoped memory for split.0']
  #allocation4 [shape = 'u32[2048]{0}', space=vmem, size = 0x2000, scoped, tag = 'scoped memory for split.0']
  #allocation5 [shape = 's32[1]{0}', space=sflag, size = 0x4, scoped, tag = 'scoped memory for split.0']
  %s0 = inlined_call_operand.vmem [shape: f32[2,8,8,128], index: 0, kind: input, shape index: {}]
  %s1 = inlined_call_operand.vmem [shape: bf16[2,8,8,64], index: 1, kind: output, shape index: {}]
  %v2 = vld [vmem:[%s0] sm:$0xff]
  %v3 = vpack.c.bf16 0.0, %v2
  %4 = vst [vmem:[%s1] sm:$0xf] %v3
  %s5 = scalar_lea.vmem %s0, 64
  %v6 = vld [vmem:[%s5] sm:$0xff]
  %s7 = scalar_lea.vmem %s1, 32
  %v8 = vpack.c.bf16 0.0, %v6
  %9 = vst [vmem:[%s7] sm:$0xf] %v8
  %s10 = scalar_lea.vmem %s0, 8
  %v11 = vld [vmem:[%s10] sm:$0xff]
  %s12 = scalar_lea.vmem %s1, 4
  %v13 = vpack.c.bf16 0.0, %v11
  %14 = vst [vmem:[%s12] sm:$0xf] %v13
  %s15 = scalar_lea.vmem %s0, 72
  %v16 = vld [vmem:[%s15] sm:$0xff]
  %s17 = scalar_lea.vmem %s1, 36
  %v18 = vpack.c.bf16 0.0, %v16
  %19 = vst [vmem:[%s17] sm:$0xf] %v18
  %s20 = scalar_lea.vmem %s0, 16
  %v21 = vld [vmem:[%s20] sm:$0xff]
  %s22 = scalar_lea.vmem %s1, 8
  %v23 = vpack.c.bf16 0.0, %v21
  %24 = vst [vmem:[%s22] sm:$0xf] %v23
  %s25 = scalar_lea.vmem %s0, 80
  %v26 = vld [vmem:[%s25] sm:$0xff]
  %s27 = scalar_lea.vmem %s1, 40
  %v28 = vpack.c.bf16 0.0, %v26
  %29 = vst [vmem:[%s27] sm:$0xf] %v28
  %s30 = scalar_lea.vmem %s0, 24
  %v31 = vld [vmem:[%s30] sm:$0xff]
  %s32 = scalar_lea.vmem %s1, 12
  %v33 = vpack.c.bf16 0.0, %v31
  %34 = vst [vmem:[%s32] sm:$0xf] %v33
  %s35 = scalar_lea.vmem %s0, 88
  %v36 = vld [vmem:[%s35] sm:$0xff]
  %s37 = scalar_lea.vmem %s1, 44
  %v38 = vpack.c.bf16 0.0, %v36
  %39 = vst [vmem:[%s37] sm:$0xf] %v38
  %s40 = scalar_lea.vmem %s0, 32
  %v41 = vld [vmem:[%s40] sm:$0xff]
  %s42 = scalar_lea.vmem %s1, 16
  %v43 = vpack.c.bf16 0.0, %v41
  %44 = vst [vmem:[%s42] sm:$0xf] %v43
  %s45 = scalar_lea.vmem %s0, 96
  %v46 = vld [vmem:[%s45] sm:$0xff]
  %s47 = scalar_lea.vmem %s1, 48
  %v48 = vpack.c.bf16 0.0, %v46
  %49 = vst [vmem:[%s47] sm:$0xf] %v48
  %s50 = scalar_lea.vmem %s0, 40
  %v51 = vld [vmem:[%s50] sm:$0xff]
  %s52 = scalar_lea.vmem %s1, 20
  %v53 = vpack.c.bf16 0.0, %v51
  %54 = vst [vmem:[%s52] sm:$0xf] %v53
  %s55 = scalar_lea.vmem %s0, 104
  %v56 = vld [vmem:[%s55] sm:$0xff]
  %s57 = scalar_lea.vmem %s1, 52
  %v58 = vpack.c.bf16 0.0, %v56
  %59 = vst [vmem:[%s57] sm:$0xf] %v58
  %s60 = scalar_lea.vmem %s0, 48
  %v61 = vld [vmem:[%s60] sm:$0xff]
  %s62 = scalar_lea.vmem %s1, 24
  %v63 = vpack.c.bf16 0.0, %v61
  %64 = vst [vmem:[%s62] sm:$0xf] %v63
  %s65 = scalar_lea.vmem %s0, 112
  %v66 = vld [vmem:[%s65] sm:$0xff]
  %s67 = scalar_lea.vmem %s1, 56
  %v68 = vpack.c.bf16 0.0, %v66
  %69 = vst [vmem:[%s67] sm:$0xf] %v68
  %s70 = scalar_lea.vmem %s0, 56
  %v71 = vld [vmem:[%s70] sm:$0xff]
  %s72 = scalar_lea.vmem %s1, 28
  %v73 = vpack.c.bf16 0.0, %v71
  %74 = vst [vmem:[%s72] sm:$0xf] %v73
  %s75 = scalar_lea.vmem %s0, 120
  %v76 = vld [vmem:[%s75] sm:$0xff]
  %s77 = scalar_lea.vmem %s1, 60
  %v78 = vpack.c.bf16 0.0, %v76
  %79 = vst [vmem:[%s77] sm:$0xf] %v78

// kernel: split.1
$region0: #{split.1}
  #allocation0 [shape = 'u32[2048]{0}', space=vmem, size = 0x2000, scoped, tag = 'scoped memory for split.1']
  #allocation1 [shape = 'u32[2048]{0}', space=vmem, size = 0x2000, scoped, tag = 'scoped memory for split.1']
  #allocation2 [shape = 'u32[2048]{0}', space=vmem, size = 0x2000, scoped, tag = 'scoped memory for split.1']
  #allocation3 [shape = 'u32[2048]{0}', space=vmem, size = 0x2000, scoped, tag = 'scoped memory for split.1']
  #allocation4 [shape = 'u32[2048]{0}', space=vmem, size = 0x2000, scoped, tag = 'scoped memory for split.1']
  #allocation5 [shape = 's32[1]{0}', space=sflag, size = 0x4, scoped, tag = 'scoped memory for split.1']
  %s0 = inlined_call_operand.vmem [shape: f32[2,8,8,128], index: 0, kind: input, shape index: {}]
  %s1 = inlined_call_operand.vmem [shape: f32[2,8,8,64], index: 1, kind: output, shape index: {}]
  %v2 = vld [vmem:[%s0] sm:$0xff]
  %v3 = vlaneseq
  %v4 = vand.u32 %v3, 127
  %vm5 = vcmp.lt.s32.totalorder %v4, 64
  %v6 = vsel %vm5, 0, %v2
  %7 = vrot.lane.b32.xlu0 %v6, 64
  %v8 = vpop.permute.xlu0 %7
  %9 = vst [vmem:[%s1] sm:$0xff] %v8
  %s10 = scalar_lea.vmem %s0, 64
  %v11 = vld [vmem:[%s10] sm:$0xff]
  %v12 = vlaneseq
  %v13 = vand.u32 %v12, 127
  %vm14 = vcmp.lt.s32.totalorder %v13, 64
  %v15 = vsel %vm14, 0, %v11
  %16 = vrot.lane.b32.xlu0 %v15, 64
  %v17 = vpop.permute.xlu0 %16
  %s18 = scalar_lea.vmem %s1, 64
  %19 = vst [vmem:[%s18] sm:$0xff] %v17
  %s20 = scalar_lea.vmem %s0, 8
  %v21 = vld [vmem:[%s20] sm:$0xff]
  %v22 = vlaneseq
  %v23 = vand.u32 %v22, 127
  %vm24 = vcmp.lt.s32.totalorder %v23, 64
  %v25 = vsel %vm24, 0, %v21
  %26 = vrot.lane.b32.xlu0 %v25, 64
  %v27 = vpop.permute.xlu0 %26
  %s28 = scalar_lea.vmem %s1, 8
  %29 = vst [vmem:[%s28] sm:$0xff] %v27
  %s30 = scalar_lea.vmem %s0, 72
  %v31 = vld [vmem:[%s30] sm:$0xff]
  %v32 = vlaneseq
  %v33 = vand.u32 %v32, 127
  %vm34 = vcmp.lt.s32.totalorder %v33, 64
  %v35 = vsel %vm34, 0, %v31
  %36 = vrot.lane.b32.xlu0 %v35, 64
  %v37 = vpop.permute.xlu0 %36
  %s38 = scalar_lea.vmem %s1, 72
  %39 = vst [vmem:[%s38] sm:$0xff] %v37
  %s40 = scalar_lea.vmem %s0, 16
  %v41 = vld [vmem:[%s40] sm:$0xff]
  %v42 = vlaneseq
  %v43 = vand.u32 %v42, 127
  %vm44 = vcmp.lt.s32.totalorder %v43, 64
  %v45 = vsel %vm44, 0, %v41
  %46 = vrot.lane.b32.xlu0 %v45, 64
  %v47 = vpop.permute.xlu0 %46
  %s48 = scalar_lea.vmem %s1, 16
  %49 = vst [vmem:[%s48] sm:$0xff] %v47
  %s50 = scalar_lea.vmem %s0, 80
  %v51 = vld [vmem:[%s50] sm:$0xff]
  %v52 = vlaneseq
  %v53 = vand.u32 %v52, 127
  %vm54 = vcmp.lt.s32.totalorder %v53, 64
  %v55 = vsel %vm54, 0, %v51
  %56 = vrot.lane.b32.xlu0 %v55, 64
  %v57 = vpop.permute.xlu0 %56
  %s58 = scalar_lea.vmem %s1, 80
  %59 = vst [vmem:[%s58] sm:$0xff] %v57
  %s60 = scalar_lea.vmem %s0, 24
  %v61 = vld [vmem:[%s60] sm:$0xff]
  %v62 = vlaneseq
  %v63 = vand.u32 %v62, 127
  %vm64 = vcmp.lt.s32.totalorder %v63, 64
  %v65 = vsel %vm64, 0, %v61
  %66 = vrot.lane.b32.xlu0 %v65, 64
  %v67 = vpop.permute.xlu0 %66
  %s68 = scalar_lea.vmem %s1, 24
  %69 = vst [vmem:[%s68] sm:$0xff] %v67
  %s70 = scalar_lea.vmem %s0, 88
  %v71 = vld [vmem:[%s70] sm:$0xff]
  %v72 = vlaneseq
  %v73 = vand.u32 %v72, 127
  %vm74 = vcmp.lt.s32.totalorder %v73, 64
  %v75 = vsel %vm74, 0, %v71
  %76 = vrot.lane.b32.xlu0 %v75, 64
  %v77 = vpop.permute.xlu0 %76
  %s78 = scalar_lea.vmem %s1, 88
  %79 = vst [vmem:[%s78] sm:$0xff] %v77
  %s80 = scalar_lea.vmem %s0, 32
  %v81 = vld [vmem:[%s80] sm:$0xff]
  %v82 = vlaneseq
  %v83 = vand.u32 %v82, 127
  %vm84 = vcmp.lt.s32.totalorder %v83, 64
  %v85 = vsel %vm84, 0, %v81
  %86 = vrot.lane.b32.xlu0 %v85, 64
  %v87 = vpop.permute.xlu0 %86
  %s88 = scalar_lea.vmem %s1, 32
  %89 = vst [vmem:[%s88] sm:$0xff] %v87
  %s90 = scalar_lea.vmem %s0, 96
  %v91 = vld [vmem:[%s90] sm:$0xff]
  %v92 = vlaneseq
  %v93 = vand.u32 %v92, 127
  %vm94 = vcmp.lt.s32.totalorder %v93, 64
  %v95 = vsel %vm94, 0, %v91
  %96 = vrot.lane.b32.xlu0 %v95, 64
  %v97 = vpop.permute.xlu0 %96
  %s98 = scalar_lea.vmem %s1, 96
  %99 = vst [vmem:[%s98] sm:$0xff] %v97
  %s100 = scalar_lea.vmem %s0, 40
  %v101 = vld [vmem:[%s100] sm:$0xff]
  %v102 = vlaneseq
  %v103 = vand.u32 %v102, 127
  %vm104 = vcmp.lt.s32.totalorder %v103, 64
  %v105 = vsel %vm104, 0, %v101
  %106 = vrot.lane.b32.xlu0 %v105, 64
  %v107 = vpop.permute.xlu0 %106
  %s108 = scalar_lea.vmem %s1, 40
  %109 = vst [vmem:[%s108] sm:$0xff] %v107
  %s110 = scalar_lea.vmem %s0, 104
  %v111 = vld [vmem:[%s110] sm:$0xff]
  %v112 = vlaneseq
  %v113 = vand.u32 %v112, 127
  %vm114 = vcmp.lt.s32.totalorder %v113, 64
  %v115 = vsel %vm114, 0, %v111
  %116 = vrot.lane.b32.xlu0 %v115, 64
  %v117 = vpop.permute.xlu0 %116
  %s118 = scalar_lea.vmem %s1, 104
  %119 = vst [vmem:[%s118] sm:$0xff] %v117
  %s120 = scalar_lea.vmem %s0, 48
  %v121 = vld [vmem:[%s120] sm:$0xff]
  %v122 = vlaneseq
  %v123 = vand.u32 %v122, 127
  %vm124 = vcmp.lt.s32.totalorder %v123, 64
  %v125 = vsel %vm124, 0, %v121
  %126 = vrot.lane.b32.xlu0 %v125, 64
  %v127 = vpop.permute.xlu0 %126
  %s128 = scalar_lea.vmem %s1, 48
  %129 = vst [vmem:[%s128] sm:$0xff] %v127
  %s130 = scalar_lea.vmem %s0, 112
  %v131 = vld [vmem:[%s130] sm:$0xff]
  %v132 = vlaneseq
  %v133 = vand.u32 %v132, 127
  %vm134 = vcmp.lt.s32.totalorder %v133, 64
  %v135 = vsel %vm134, 0, %v131
  %136 = vrot.lane.b32.xlu0 %v135, 64
  %v137 = vpop.permute.xlu0 %136
  %s138 = scalar_lea.vmem %s1, 112
  %139 = vst [vmem:[%s138] sm:$0xff] %v137
  %s140 = scalar_lea.vmem %s0, 56
  %v141 = vld [vmem:[%s140] sm:$0xff]
  %v142 = vlaneseq
  %v143 = vand.u32 %v142, 127
  %vm144 = vcmp.lt.s32.totalorder %v143, 64
  %v145 = vsel %vm144, 0, %v141
  %146 = vrot.lane.b32.xlu0 %v145, 64
  %v147 = vpop.permute.xlu0 %146
  %s148 = scalar_lea.vmem %s1, 56
  %149 = vst [vmem:[%s148] sm:$0xff] %v147
  %s150 = scalar_lea.vmem %s0, 120
  %v151 = vld [vmem:[%s150] sm:$0xff]
  %v152 = vlaneseq
  %v153 = vand.u32 %v152, 127
  %vm154 = vcmp.lt.s32.totalorder %v153, 64
  %v155 = vsel %vm154, 0, %v151
  %156 = vrot.lane.b32.xlu0 %v155, 64
  %v157 = vpop.permute.xlu0 %156
  %s158 = scalar_lea.vmem %s1, 120
  %159 = vst [vmem:[%s158] sm:$0xff] %v157

// kernel: ss2d_forward.2
$region0: #{ss2d_forward.2}
  #allocation0 [shape = 'u32[]', space=smem, size = 0x4, offset = 0x4, fixed_abs, tag = 'smem constant byte address 0x4 - core index']
  #allocation1 [shape = 'u32[72,128]{1,0:T(1,128)}', space=vmem, size = 0x9000, scoped, tag = 'internal scratch']
  #allocation2 [shape = 'f32[16,128]{1,0:T(8,128)}', space=vmem, size = 0x2000, scoped, tag = 'scratch operand']
  %s0 = inlined_call_operand.vmem [shape: f32[2,4,64,128], index: 0, kind: input, shape index: {}]
  %s1 = inlined_call_operand.vmem [shape: f32[2,4,64,128], index: 1, kind: input, shape index: {}]
  %s2 = inlined_call_operand.vmem [shape: f32[2,4,64,32], index: 2, kind: input, shape index: {}]
  %s3 = inlined_call_operand.vmem [shape: f32[4,18,128], index: 3, kind: input, shape index: {}]
  %s4 = inlined_call_operand.vmem [shape: f32[2,4,64,128], index: 4, kind: output, shape index: {}]
  %s5 = sld [smem:[#allocation0]]
  $region60: #{ss2d_forward.2} parent=0
    _
  %s7 = ssub.s32 1, %s5
  %s8 = scalar_select 0, %s7, %s5
  loop: start=0, step=1, limit=10
  $region2: #{ss2d_forward.2} parent=0 // loop_pre_header
    _
  $region3: #{ss2d_forward.2} parent=0 // loop_header
    %s10 = sphi 0, %s14
    %p11 = scmp.ge.s32.totalorder %s10, 10
    %s17 = sphi 0, %s36
    %s18 = sphi 0, %s32
    %s19 = sphi 0, %s28
    %s20 = sphi 0, %s17
    %s21 = sphi 0, %s18
    %s22 = sphi 0, %s19
    %s23 = sphi 0, %s20
    %s24 = sphi 0, %s21
    %s25 = sphi 0, %s22
    %s43 = sphi 0, %s45
    %s46 = sphi 0, %s43
    %s47 = sphi 0, %s46
    %s63 = sphi 0, %s47
    %s73 = sphi 0, %s75
    %s76 = sphi 0, %s73
    %s77 = sphi 0, %s76
    %s93 = sphi 0, %s77
    %s103 = sphi 0, %s105
    %s106 = sphi 0, %s103
    %s107 = sphi 0, %s106
    %s123 = sphi 0, %s107
    %s129 = sphi 0, %s131
    %s132 = sphi 0, %s129
    %s133 = sphi 0, %s132
    %s149 = sphi 0, %s133
    %s159 = sphi 0, %s161
    %s162 = sphi 0, %s159
    %s163 = sphi 0, %s162
    %s179 = sphi 0, %s163
  $region4: #{ss2d_forward.2} parent=0 // loop_header_branch
    %13 = sbr.rel (%p11) target = $region8
  $region5: #{ss2d_forward.2} parent=0 // loop_body
    %s15 = ssub.s32 %s10, 1
    %s16 = ssub.s32 %s10, 2
    %s26 = sadd.s32 1, %s19
    %p27 = scmp.ge.s32.totalorder %s26, 1
    %s28 = scalar_select %p27, 0, %s26
    %s29 = sadd.s32 1, %s18
    %s30 = scalar_select %p27, %s29, %s18
    %p31 = scmp.ge.s32.totalorder %s30, 4
    %s32 = scalar_select %p31, 0, %s30
    %s33 = sadd.s32 1, %s17
    %s34 = scalar_select %p31, %s33, %s17
    %p35 = scmp.ge.s32.totalorder %s34, 2
    %s36 = scalar_select %p35, 0, %s34
    %s37 = ssub.s32 %s17, %s36
    %s38 = ssub.s32 %s18, %s32
    %s39 = sor.u32 %s37, %s38
    %s40 = ssub.s32 %s19, %s28
    %s41 = sor.u32 %s39, %s40
    %p42 = scmp.eq.s32.totalorder %s41, 0
    %s44 = sadd.s32 %s43, 1
    %s45 = scalar_select %p42, %s43, %s44
    %p48 = pneg %p42
    %p49 = scmp.eq.s32.totalorder %s10, 7
    %p50 = por %p48, %p49
    %p51 = scmp.ne.s32.totalorder %s43, %s46
    %p52 = scmp.eq.s32.totalorder %s10, 0
    %p53 = por %p51, %p52
    %p54 = scmp.ne.s32.totalorder %s43, %s46
    %p55 = scmp.eq.s32.totalorder %s15, 7
    %p56 = por %p54, %p55
    %p57 = scmp.ne.s32.totalorder %s46, %s47
    %p58 = scmp.eq.s32.totalorder %s15, 0
    %p59 = por %p57, %p58
    %p60 = scmp.ne.s32.totalorder %s46, %s47
    %p61 = scmp.eq.s32.totalorder %s16, 7
    %p62 = por %p60, %p61
    %p64 = scmp.ne.s32.totalorder %s47, %s63
    %p65 = scmp.eq.s32.totalorder %s16, 0
    %p66 = por %p64, %p65
    %s67 = ssub.s32 %s17, %s36
    %s68 = ssub.s32 %s18, %s32
    %s69 = sor.u32 %s67, %s68
    %s70 = ssub.s32 %s19, %s28
    %s71 = sor.u32 %s69, %s70
    %p72 = scmp.eq.s32.totalorder %s71, 0
    %s74 = sadd.s32 %s73, 1
    %s75 = scalar_select %p72, %s73, %s74
    %p78 = pneg %p72
    %p79 = scmp.eq.s32.totalorder %s10, 7
    %p80 = por %p78, %p79
    %p81 = scmp.ne.s32.totalorder %s73, %s76
    %p82 = scmp.eq.s32.totalorder %s10, 0
    %p83 = por %p81, %p82
    %p84 = scmp.ne.s32.totalorder %s73, %s76
    %p85 = scmp.eq.s32.totalorder %s15, 7
    %p86 = por %p84, %p85
    %p87 = scmp.ne.s32.totalorder %s76, %s77
    %p88 = scmp.eq.s32.totalorder %s15, 0
    %p89 = por %p87, %p88
    %p90 = scmp.ne.s32.totalorder %s76, %s77
    %p91 = scmp.eq.s32.totalorder %s16, 7
    %p92 = por %p90, %p91
    %p94 = scmp.ne.s32.totalorder %s77, %s93
    %p95 = scmp.eq.s32.totalorder %s16, 0
    %p96 = por %p94, %p95
    %s97 = ssub.s32 %s17, %s36
    %s98 = ssub.s32 %s18, %s32
    %s99 = sor.u32 %s97, %s98
    %s100 = ssub.s32 %s19, %s28
    %s101 = sor.u32 %s99, %s100
    %p102 = scmp.eq.s32.totalorder %s101, 0
    %s104 = sadd.s32 %s103, 1
    %s105 = scalar_select %p102, %s103, %s104
    %p108 = pneg %p102
    %p109 = scmp.eq.s32.totalorder %s10, 7
    %p110 = por %p108, %p109
    %p111 = scmp.ne.s32.totalorder %s103, %s106
    %p112 = scmp.eq.s32.totalorder %s10, 0
    %p113 = por %p111, %p112
    %p114 = scmp.ne.s32.totalorder %s103, %s106
    %p115 = scmp.eq.s32.totalorder %s15, 7
    %p116 = por %p114, %p115
    %p117 = scmp.ne.s32.totalorder %s106, %s107
    %p118 = scmp.eq.s32.totalorder %s15, 0
    %p119 = por %p117, %p118
    %p120 = scmp.ne.s32.totalorder %s106, %s107
    %p121 = scmp.eq.s32.totalorder %s16, 7
    %p122 = por %p120, %p121
    %p124 = scmp.ne.s32.totalorder %s107, %s123
    %p125 = scmp.eq.s32.totalorder %s16, 0
    %p126 = por %p124, %p125
    %s127 = ssub.s32 %s18, %s32
    %p128 = scmp.eq.s32.totalorder %s127, 0
    %s130 = sadd.s32 %s129, 1
    %s131 = scalar_select %p128, %s129, %s130
    %p134 = pneg %p128
    %p135 = scmp.eq.s32.totalorder %s10, 7
    %p136 = por %p134, %p135
    %p137 = scmp.ne.s32.totalorder %s129, %s132
    %p138 = scmp.eq.s32.totalorder %s10, 0
    %p139 = por %p137, %p138
    %p140 = scmp.ne.s32.totalorder %s129, %s132
    %p141 = scmp.eq.s32.totalorder %s15, 7
    %p142 = por %p140, %p141
    %p143 = scmp.ne.s32.totalorder %s132, %s133
    %p144 = scmp.eq.s32.totalorder %s15, 0
    %p145 = por %p143, %p144
    %p146 = scmp.ne.s32.totalorder %s132, %s133
    %p147 = scmp.eq.s32.totalorder %s16, 7
    %p148 = por %p146, %p147
    %p150 = scmp.ne.s32.totalorder %s133, %s149
    %p151 = scmp.eq.s32.totalorder %s16, 0
    %p152 = por %p150, %p151
    %s153 = ssub.s32 %s17, %s36
    %s154 = ssub.s32 %s18, %s32
    %s155 = sor.u32 %s153, %s154
    %s156 = ssub.s32 %s19, %s28
    %s157 = sor.u32 %s155, %s156
    %p158 = scmp.eq.s32.totalorder %s157, 0
    %s160 = sadd.s32 %s159, 1
    %s161 = scalar_select %p158, %s159, %s160
    %p164 = pneg %p158
    %p165 = scmp.eq.s32.totalorder %s10, 7
    %p166 = por %p164, %p165
    %p167 = scmp.ne.s32.totalorder %s159, %s162
    %p168 = scmp.eq.s32.totalorder %s10, 0
    %p169 = por %p167, %p168
    %p170 = scmp.ne.s32.totalorder %s159, %s162
    %p171 = scmp.eq.s32.totalorder %s15, 7
    %p172 = por %p170, %p171
    %p173 = scmp.ne.s32.totalorder %s162, %s163
    %p174 = scmp.eq.s32.totalorder %s15, 0
    %p175 = por %p173, %p174
    %p176 = scmp.ne.s32.totalorder %s162, %s163
    %p177 = scmp.eq.s32.totalorder %s16, 7
    %p178 = por %p176, %p177
    %p180 = scmp.ne.s32.totalorder %s163, %s179
    %p181 = scmp.eq.s32.totalorder %s16, 0
    %p182 = por %p180, %p181
    %p183 = scmp.le.s32.totalorder 1, %s10
    %p184 = scmp.lt.s32.totalorder %s10, 9
    %p185 = pnand %p183, %p184
    %p186 = pneg %p185
    // Predicated region
    $region9: #{ss2d_forward.2} parent=5 // pred_check
      _
    $region10: #{ss2d_forward.2} parent=5 // pred_check_branch
      %188 = sbr.rel (%p185) target = $region12
    $region11: #{ss2d_forward.2} parent=5 // pred_region
      %s189 = ssub.s32 %s10, 1
    $region12: #{ss2d_forward.2} parent=5 // pred_fallthru
      _
    %p190 = scmp.lt.s32.totalorder %s10, 8
    // Predicated region
    $region13: #{ss2d_forward.2} parent=5 // pred_check
      %p191 = pneg %p190
    $region14: #{ss2d_forward.2} parent=5 // pred_check_branch
      %193 = sbr.rel (%p191) target = $region16
    $region15: #{ss2d_forward.2} parent=5 // pred_region
      // Predicated region
      $region17: #{ss2d_forward.2} parent=15 // pred_check
        %p194 = pneg %p53
      $region18: #{ss2d_forward.2} parent=15 // pred_check_branch
        %196 = sbr.rel (%p194) target = $region20
      $region19: #{ss2d_forward.2} parent=15 // pred_region
        %s197 = smul.u32 8, %s19
        %p198 = scmp.lt.s32.totalorder %s17, 1
        %s199 = scalar_select %p198, %s17, 1
        %p200 = scmp.lt.s32.totalorder %s18, 3
        %s201 = scalar_select %p200, %s18, 3
        %p202 = scmp.lt.s32.totalorder %s197, 7
        %s203 = scalar_select %p202, %s197, 7
        %s204 = smul.addr %s201, 8
        %s205 = sadd.s32 %s203, %s204
        %s206 = smul.addr %s199, 32
        %s207 = sadd.s32 %s205, %s206
        %s208 = smul.addr %s207, 8
        %s209 = scalar_lea.vmem %s0, %s208
        %s210 = smul.u32 8, %s19
      $region20: #{ss2d_forward.2} parent=15 // pred_fallthru
        _
      // Predicated region
      $region21: #{ss2d_forward.2} parent=15 // pred_check
        %p211 = pneg %p83
      $region22: #{ss2d_forward.2} parent=15 // pred_check_branch
        %213 = sbr.rel (%p211) target = $region24
      $region23: #{ss2d_forward.2} parent=15 // pred_region
        %s214 = smul.u32 8, %s19
        %p215 = scmp.lt.s32.totalorder %s17, 1
        %s216 = scalar_select %p215, %s17, 1
        %p217 = scmp.lt.s32.totalorder %s18, 3
        %s218 = scalar_select %p217, %s18, 3
        %p219 = scmp.lt.s32.totalorder %s214, 7
        %s220 = scalar_select %p219, %s214, 7
        %s221 = smul.addr %s218, 8
        %s222 = sadd.s32 %s220, %s221
        %s223 = smul.addr %s216, 32
        %s224 = sadd.s32 %s222, %s223
        %s225 = smul.addr %s224, 8
        %s226 = scalar_lea.vmem %s1, %s225
        %s227 = smul.u32 8, %s19
      $region24: #{ss2d_forward.2} parent=15 // pred_fallthru
        _
      // Predicated region
      $region25: #{ss2d_forward.2} parent=15 // pred_check
        %p228 = pneg %p113
      $region26: #{ss2d_forward.2} parent=15 // pred_check_branch
        %230 = sbr.rel (%p228) target = $region28
      $region27: #{ss2d_forward.2} parent=15 // pred_region
        %s231 = smul.u32 8, %s19
        %p232 = scmp.lt.s32.totalorder %s17, 1
        %s233 = scalar_select %p232, %s17, 1
        %p234 = scmp.lt.s32.totalorder %s18, 3
        %s235 = scalar_select %p234, %s18, 3
        %p236 = scmp.lt.s32.totalorder %s231, 7
        %s237 = scalar_select %p236, %s231, 7
        %s238 = smul.addr %s235, 8
        %s239 = sadd.s32 %s237, %s238
        %s240 = smul.addr %s233, 32
        %s241 = sadd.s32 %s239, %s240
        %s242 = smul.addr %s241, 8
        %s243 = scalar_lea.vmem %s2, %s242
        %s244 = smul.u32 8, %s19
      $region28: #{ss2d_forward.2} parent=15 // pred_fallthru
        _
      // Predicated region
      $region29: #{ss2d_forward.2} parent=15 // pred_check
        %p245 = pneg %p139
      $region30: #{ss2d_forward.2} parent=15 // pred_check_branch
        %247 = sbr.rel (%p245) target = $region32
      $region31: #{ss2d_forward.2} parent=15 // pred_region
        %p248 = scmp.lt.s32.totalorder %s18, 3
        %s249 = scalar_select %p248, %s18, 3
        %s250 = smul.addr %s249, 3
        %s251 = smul.addr %s250, 8
        %s252 = scalar_lea.vmem %s3, %s251
      $region32: #{ss2d_forward.2} parent=15 // pred_fallthru
        _
    $region16: #{ss2d_forward.2} parent=5 // pred_fallthru
      _
    %p253 = scmp.le.s32.totalorder 1, %s10
    %p254 = scmp.lt.s32.totalorder %s10, 9
    %p255 = pnand %p253, %p254
    %p256 = pneg %p255
    // Predicated region
    $region33: #{ss2d_forward.2} parent=5 // pred_check
      _
    $region34: #{ss2d_forward.2} parent=5 // pred_check_branch
      %258 = sbr.rel (%p255) target = $region36
    $region35: #{ss2d_forward.2} parent=5 // pred_region
      %s259 = ssub.s32 %s10, 1
      %s260 = smul.u32 8, %s22
      %p261 = scmp.lt.s32.totalorder %s20, 1
      %s262 = scalar_select %p261, %s20, 1
      %p263 = scmp.lt.s32.totalorder %s21, 3
      %s264 = scalar_select %p263, %s21, 3
      %p265 = scmp.lt.s32.totalorder %s260, 7
      %s266 = scalar_select %p265, %s260, 7
      %s267 = smul.addr %s264, 8
      %s268 = sadd.s32 %s266, %s267
      %s269 = smul.addr %s262, 32
      %s270 = sadd.s32 %s268, %s269
      %s271 = smul.addr %s270, 8
      %s272 = scalar_lea.vmem %s0, %s271
      %p273 = pneg %p59
      %p274 = pneg %p56
      %s275 = smul.u32 8, %s22
      %p276 = scmp.lt.s32.totalorder %s20, 1
      %s277 = scalar_select %p276, %s20, 1
      %p278 = scmp.lt.s32.totalorder %s21, 3
      %s279 = scalar_select %p278, %s21, 3
      %p280 = scmp.lt.s32.totalorder %s275, 7
      %s281 = scalar_select %p280, %s275, 7
      %s282 = smul.addr %s279, 8
      %s283 = sadd.s32 %s281, %s282
      %s284 = smul.addr %s277, 32
      %s285 = sadd.s32 %s283, %s284
      %s286 = smul.addr %s285, 8
      %s287 = scalar_lea.vmem %s1, %s286
      %p288 = pneg %p89
      %p289 = pneg %p86
      %s290 = smul.u32 8, %s22
      %p291 = scmp.lt.s32.totalorder %s20, 1
      %s292 = scalar_select %p291, %s20, 1
      %p293 = scmp.lt.s32.totalorder %s21, 3
      %s294 = scalar_select %p293, %s21, 3
      %p295 = scmp.lt.s32.totalorder %s290, 7
      %s296 = scalar_select %p295, %s290, 7
      %s297 = smul.addr %s294, 8
      %s298 = sadd.s32 %s296, %s297
      %s299 = smul.addr %s292, 32
      %s300 = sadd.s32 %s298, %s299
      %s301 = smul.addr %s300, 8
      %s302 = scalar_lea.vmem %s2, %s301
      %p303 = pneg %p119
      %p304 = pneg %p116
      %p305 = scmp.lt.s32.totalorder %s21, 3
      %s306 = scalar_select %p305, %s21, 3
      %s307 = smul.addr %s306, 3
      %s308 = smul.addr %s307, 8
      %s309 = scalar_lea.vmem %s3, %s308
      %p310 = pneg %p145
      %p311 = pneg %p142
      %p312 = pneg %p175
      %p313 = pneg %p172
      %s314 = smul.u32 8, %s22
      %p315 = scmp.lt.s32.totalorder %s20, 1
      %s316 = scalar_select %p315, %s20, 1
      %p317 = scmp.lt.s32.totalorder %s21, 3
      %s318 = scalar_select %p317, %s21, 3
      %p319 = scmp.lt.s32.totalorder %s314, 7
      %s320 = scalar_select %p319, %s314, 7
      %s321 = smul.addr %s318, 8
      %s322 = sadd.s32 %s320, %s321
      %s323 = smul.addr %s316, 32
      %s324 = sadd.s32 %s322, %s323
      %s325 = smul.addr %s324, 8
      %s326 = scalar_lea.vmem %s4, %s325
      %s327 = smul.u32 8, %s22
      %p328 = scmp.lt.s32.totalorder %s20, 1
      %s329 = scalar_select %p328, %s20, 1
      %p330 = scmp.lt.s32.totalorder %s21, 3
      %s331 = scalar_select %p330, %s21, 3
      %p332 = scmp.lt.s32.totalorder %s327, 7
      %s333 = scalar_select %p332, %s327, 7
      %s334 = smul.addr %s331, 8
      %s335 = sadd.s32 %s333, %s334
      %s336 = smul.addr %s329, 32
      %s337 = sadd.s32 %s335, %s336
      %s338 = smul.addr %s337, 8
      %s339 = scalar_lea.vmem %s0, %s338
      %s340 = smul.u32 8, %s22
      %s341 = smul.u32 8, %s22
      %p342 = scmp.lt.s32.totalorder %s20, 1
      %s343 = scalar_select %p342, %s20, 1
      %p344 = scmp.lt.s32.totalorder %s21, 3
      %s345 = scalar_select %p344, %s21, 3
      %p346 = scmp.lt.s32.totalorder %s341, 7
      %s347 = scalar_select %p346, %s341, 7
      %s348 = smul.addr %s345, 8
      %s349 = sadd.s32 %s347, %s348
      %s350 = smul.addr %s343, 32
      %s351 = sadd.s32 %s349, %s350
      %s352 = smul.addr %s351, 8
      %s353 = scalar_lea.vmem %s1, %s352
      %s354 = smul.u32 8, %s22
      %s355 = smul.u32 8, %s22
      %p356 = scmp.lt.s32.totalorder %s20, 1
      %s357 = scalar_select %p356, %s20, 1
      %p358 = scmp.lt.s32.totalorder %s21, 3
      %s359 = scalar_select %p358, %s21, 3
      %p360 = scmp.lt.s32.totalorder %s355, 7
      %s361 = scalar_select %p360, %s355, 7
      %s362 = smul.addr %s359, 8
      %s363 = sadd.s32 %s361, %s362
      %s364 = smul.addr %s357, 32
      %s365 = sadd.s32 %s363, %s364
      %s366 = smul.addr %s365, 8
      %s367 = scalar_lea.vmem %s2, %s366
      %s368 = smul.u32 8, %s22
      %p369 = scmp.lt.s32.totalorder %s21, 3
      %s370 = scalar_select %p369, %s21, 3
      %s371 = smul.addr %s370, 3
      %s372 = smul.addr %s371, 8
      %s373 = scalar_lea.vmem %s3, %s372
      %s374 = smul.u32 8, %s22
      %p375 = scmp.lt.s32.totalorder %s20, 1
      %s376 = scalar_select %p375, %s20, 1
      %p377 = scmp.lt.s32.totalorder %s21, 3
      %s378 = scalar_select %p377, %s21, 3
      %p379 = scmp.lt.s32.totalorder %s374, 7
      %s380 = scalar_select %p379, %s374, 7
      %s381 = smul.addr %s378, 8
      %s382 = sadd.s32 %s380, %s381
      %s383 = smul.addr %s376, 32
      %s384 = sadd.s32 %s382, %s383
      %s385 = smul.addr %s384, 8
      %s386 = scalar_lea.vmem %s4, %s385
      %s387 = smul.u32 8, %s22
      %v388 = vld [vmem:[%s373] sm:$0xff]
      %v389 = vld [vmem:[%s373 + $0x8] sm:$0xff]
      %v390 = vld [vmem:[%s373 + $0x10] sm:$0x1]
      %v391 = vld [vmem:[%s373 + $0x11] sm:$0x1]
      %p392 = scmp.eq.s32.totalorder %s22, 0
      // Predicated region
      $region37: #{ss2d_forward.2} parent=35 // pred_check
        %p393 = pneg %p392
      $region38: #{ss2d_forward.2} parent=35 // pred_check_branch
        %395 = sbr.rel (%p393) target = $region40
      $region39: #{ss2d_forward.2} parent=35 // pred_region
        %396 = vst [vmem:[#allocation2] sm:$0xff] 0.0
        %397 = vst [vmem:[#allocation2 + $0x8] sm:$0xff] 0.0
      $region40: #{ss2d_forward.2} parent=35 // pred_fallthru
        _
      loop: start=0, step=1, limit=8
      $region41: #{ss2d_forward.2} parent=35 // loop_pre_header
        _
      $region42: #{ss2d_forward.2} parent=35 // loop_header
        %s399 = sphi 0, %s403
        %p400 = scmp.ge.s32.totalorder %s399, 8
      $region43: #{ss2d_forward.2} parent=35 // loop_header_branch
        %402 = sbr.rel (%p400) target = $region47
      $region44: #{ss2d_forward.2} parent=35 // loop_body
        %s404 = smul.u32 %s399, 8
        %s405 = scalar_lea.vmem %s339, %s404
        %v406 = vld [vmem:[%s405] sm:$0xff]
        %s407 = scalar_lea.vmem %s353, %s404
        %v408 = vld [vmem:[%s407] sm:$0xff]
        %v409 = vperm.slane %v391, 0
        %v410 = vadd.f32 %v408, %v409
        %v411 = vmin.f32 %v410, 30.0
        %vm412 = vcmp.gt.f32.partialorder %v410, 30.0
        %v413 = vmul.f32 %v411, 1.442695
        %v414 = vpow.pop %v413
        %v415 = vadd.f32 %v414, 1.0
        %v416 = vlog2.pop %v415
        %v417 = vmul.f32 %v416, 0.6931472
        %v418 = vsel %vm412, %v410, %v417
        %s419 = scalar_lea.vmem %s367, %s404
        %v420 = vld [vmem:[%s419] sm:$0xff]
        %v422 = vrot.slane %v418, 1
        %v423 = vrot.slane %v418, 2
        %v424 = vrot.slane %v418, 3
        %v425 = vrot.slane %v418, 4
        %v426 = vrot.slane %v418, 5
        %v427 = vrot.slane %v418, 6
        %v428 = vrot.slane %v418, 7
        %v429 = vperm.slane %v418, 0
        %v430 = vperm.slane %v422, 0
        %v431 = vperm.slane %v423, 0
        %v432 = vperm.slane %v424, 0
        %v433 = vperm.slane %v425, 0
        %v434 = vperm.slane %v426, 0
        %v435 = vperm.slane %v427, 0
        %v436 = vperm.slane %v428, 0
        %v445 = vmul.f32 %v429, %v388
        %v446 = vmul.f32 %v429, %v389
        %v447 = vmul.f32 %v430, %v388
        %v448 = vmul.f32 %v430, %v389
        %v449 = vmul.f32 %v431, %v388
        %v450 = vmul.f32 %v431, %v389
        %v451 = vmul.f32 %v432, %v388
        %v452 = vmul.f32 %v432, %v389
        %v453 = vmul.f32 %v433, %v388
        %v454 = vmul.f32 %v433, %v389
        %v455 = vmul.f32 %v434, %v388
        %v456 = vmul.f32 %v434, %v389
        %v457 = vmul.f32 %v435, %v388
        %v458 = vmul.f32 %v435, %v389
        %v459 = vmul.f32 %v436, %v388
        %v460 = vmul.f32 %v436, %v389
        %v461 = vmul.f32 %v445, 1.442695
        %v462 = vpow.pop %v461
        %v463 = vmul.f32 %v446, 1.442695
        %v464 = vpow.pop %v463
        %v465 = vmul.f32 %v447, 1.442695
        %v466 = vpow.pop %v465
        %v467 = vmul.f32 %v448, 1.442695
        %v468 = vpow.pop %v467
        %v469 = vmul.f32 %v449, 1.442695
        %v470 = vpow.pop %v469
        %v471 = vmul.f32 %v450, 1.442695
        %v472 = vpow.pop %v471
        %v473 = vmul.f32 %v451, 1.442695
        %v474 = vpow.pop %v473
        %v475 = vmul.f32 %v452, 1.442695
        %v476 = vpow.pop %v475
        %v477 = vmul.f32 %v453, 1.442695
        %v478 = vpow.pop %v477
        %v479 = vmul.f32 %v454, 1.442695
        %v480 = vpow.pop %v479
        %v481 = vmul.f32 %v455, 1.442695
        %v482 = vpow.pop %v481
        %v483 = vmul.f32 %v456, 1.442695
        %v484 = vpow.pop %v483
        %v485 = vmul.f32 %v457, 1.442695
        %v486 = vpow.pop %v485
        %v487 = vmul.f32 %v458, 1.442695
        %v488 = vpow.pop %v487
        %v489 = vmul.f32 %v459, 1.442695
        %v490 = vpow.pop %v489
        %v491 = vmul.f32 %v460, 1.442695
        %v492 = vpow.pop %v491
        %v493 = vmul.f32 %v418, %v406
        %v495 = vrot.slane %v493, 1
        %v496 = vrot.slane %v493, 2
        %v497 = vrot.slane %v493, 3
        %v498 = vrot.slane %v493, 4
        %v499 = vrot.slane %v493, 5
        %v500 = vrot.slane %v493, 6
        %v501 = vrot.slane %v493, 7
        %v502 = vperm.slane %v420, 0
        %v503 = vlaneseq
        %v504 = vshrl.u32 %v503, 7
        %506 = vset.pattern.permute.xlu0 %v504
        %507 = vperm.xlu0 %506, %v502
        %v508 = vpop.permute.xlu0 %507
        %v509 = vlaneseq
        %v510 = vshrl.u32 %v509, 7
        %v511 = vadd.s32 %v510, 8
        %512 = vset.pattern.permute.xlu0 %v511
        %513 = vperm.xlu0 %512, %v502
        %v514 = vpop.permute.xlu0 %513
        %v515 = vperm.slane %v420, 1
        %v516 = vlaneseq
        %v517 = vshrl.u32 %v516, 7
        %519 = vset.pattern.permute.xlu0 %v517
        %520 = vperm.xlu0 %519, %v515
        %v521 = vpop.permute.xlu0 %520
        %v522 = vlaneseq
        %v523 = vshrl.u32 %v522, 7
        %v524 = vadd.s32 %v523, 8
        %525 = vset.pattern.permute.xlu0 %v524
        %526 = vperm.xlu0 %525, %v515
        %v527 = vpop.permute.xlu0 %526
        %v528 = vperm.slane %v420, 2
        %v529 = vlaneseq
        %v530 = vshrl.u32 %v529, 7
        %532 = vset.pattern.permute.xlu0 %v530
        %533 = vperm.xlu0 %532, %v528
        %v534 = vpop.permute.xlu0 %533
        %v535 = vlaneseq
        %v536 = vshrl.u32 %v535, 7
        %v537 = vadd.s32 %v536, 8
        %538 = vset.pattern.permute.xlu0 %v537
        %539 = vperm.xlu0 %538, %v528
        %v540 = vpop.permute.xlu0 %539
        %v541 = vperm.slane %v420, 3
        %v542 = vlaneseq
        %v543 = vshrl.u32 %v542, 7
        %545 = vset.pattern.permute.xlu0 %v543
        %546 = vperm.xlu0 %545, %v541
        %v547 = vpop.permute.xlu0 %546
        %v548 = vlaneseq
        %v549 = vshrl.u32 %v548, 7
        %v550 = vadd.s32 %v549, 8
        %551 = vset.pattern.permute.xlu0 %v550
        %552 = vperm.xlu0 %551, %v541
        %v553 = vpop.permute.xlu0 %552
        %v554 = vperm.slane %v420, 4
        %v555 = vlaneseq
        %v556 = vshrl.u32 %v555, 7
        %558 = vset.pattern.permute.xlu0 %v556
        %559 = vperm.xlu0 %558, %v554
        %v560 = vpop.permute.xlu0 %559
        %v561 = vlaneseq
        %v562 = vshrl.u32 %v561, 7
        %v563 = vadd.s32 %v562, 8
        %564 = vset.pattern.permute.xlu0 %v563
        %565 = vperm.xlu0 %564, %v554
        %v566 = vpop.permute.xlu0 %565
        %v567 = vperm.slane %v420, 5
        %v568 = vlaneseq
        %v569 = vshrl.u32 %v568, 7
        %571 = vset.pattern.permute.xlu0 %v569
        %572 = vperm.xlu0 %571, %v567
        %v573 = vpop.permute.xlu0 %572
        %v574 = vlaneseq
        %v575 = vshrl.u32 %v574, 7
        %v576 = vadd.s32 %v575, 8
        %577 = vset.pattern.permute.xlu0 %v576
        %578 = vperm.xlu0 %577, %v567
        %v579 = vpop.permute.xlu0 %578
        %v580 = vperm.slane %v420, 6
        %v581 = vlaneseq
        %v582 = vshrl.u32 %v581, 7
        %584 = vset.pattern.permute.xlu0 %v582
        %585 = vperm.xlu0 %584, %v580
        %v586 = vpop.permute.xlu0 %585
        %v587 = vlaneseq
        %v588 = vshrl.u32 %v587, 7
        %v589 = vadd.s32 %v588, 8
        %590 = vset.pattern.permute.xlu0 %v589
        %591 = vperm.xlu0 %590, %v580
        %v592 = vpop.permute.xlu0 %591
        %v593 = vperm.slane %v420, 7
        %v594 = vlaneseq
        %v595 = vshrl.u32 %v594, 7
        %597 = vset.pattern.permute.xlu0 %v595
        %598 = vperm.xlu0 %597, %v593
        %v599 = vpop.permute.xlu0 %598
        %v600 = vlaneseq
        %v601 = vshrl.u32 %v600, 7
        %v602 = vadd.s32 %v601, 8
        %603 = vset.pattern.permute.xlu0 %v602
        %604 = vperm.xlu0 %603, %v593
        %v605 = vpop.permute.xlu0 %604
        %v606 = vperm.slane %v493, 0
        %v607 = vperm.slane %v495, 0
        %v608 = vperm.slane %v496, 0
        %v609 = vperm.slane %v497, 0
        %v610 = vperm.slane %v498, 0
        %v611 = vperm.slane %v499, 0
        %v612 = vperm.slane %v500, 0
        %v613 = vperm.slane %v501, 0
        %v622 = vmul.f32 %v606, %v508
        %v623 = vmul.f32 %v606, %v514
        %v624 = vmul.f32 %v607, %v521
        %v625 = vmul.f32 %v607, %v527
        %v626 = vmul.f32 %v608, %v534
        %v627 = vmul.f32 %v608, %v540
        %v628 = vmul.f32 %v609, %v547
        %v629 = vmul.f32 %v609, %v553
        %v630 = vmul.f32 %v610, %v560
        %v631 = vmul.f32 %v610, %v566
        %v632 = vmul.f32 %v611, %v573
        %v633 = vmul.f32 %v611, %v579
        %v634 = vmul.f32 %v612, %v586
        %v635 = vmul.f32 %v612, %v592
        %v636 = vmul.f32 %v613, %v599
        %v637 = vmul.f32 %v613, %v605
        %v638 = vld [vmem:[#allocation2] sm:$0xff]
        %v639 = vld [vmem:[#allocation2 + $0x8] sm:$0xff]
        %v640 = vmul.f32 %v462, %v638
        %v641 = vmul.f32 %v464, %v639
        %v642 = vadd.f32 %v640, %v622
        %v643 = vadd.f32 %v641, %v623
        %v644 = vmul.f32 %v466, %v642
        %v645 = vmul.f32 %v468, %v643
        %v646 = vadd.f32 %v644, %v624
        %v647 = vadd.f32 %v645, %v625
        %v648 = vmul.f32 %v470, %v646
        %v649 = vmul.f32 %v472, %v647
        %v650 = vadd.f32 %v648, %v626
        %v651 = vadd.f32 %v649, %v627
        %v652 = vmul.f32 %v474, %v650
        %v653 = vmul.f32 %v476, %v651
        %v654 = vadd.f32 %v652, %v628
        %v655 = vadd.f32 %v653, %v629
        %v656 = vmul.f32 %v478, %v654
        %v657 = vmul.f32 %v480, %v655
        %v658 = vadd.f32 %v656, %v630
        %v659 = vadd.f32 %v657, %v631
        %v660 = vmul.f32 %v482, %v658
        %v661 = vmul.f32 %v484, %v659
        %v662 = vadd.f32 %v660, %v632
        %v663 = vadd.f32 %v661, %v633
        %v664 = vmul.f32 %v486, %v662
        %v665 = vmul.f32 %v488, %v663
        %v666 = vadd.f32 %v664, %v634
        %v667 = vadd.f32 %v665, %v635
        %v668 = vmul.f32 %v490, %v666
        %v669 = vmul.f32 %v492, %v667
        %v670 = vadd.f32 %v668, %v636
        %v671 = vadd.f32 %v669, %v637
        %672 = vst [vmem:[#allocation2] sm:$0xff] %v670
        %673 = vst [vmem:[#allocation2 + $0x8] sm:$0xff] %v671
        %v674 = vlaneseq
        %v675 = vshrl.u32 %v674, 7
        %v676 = vadd.s32 %v675, 16
        %677 = vset.pattern.permute.xlu0 %v676
        %678 = vperm.xlu0 %677, %v502
        %v679 = vpop.permute.xlu0 %678
        %v680 = vlaneseq
        %v681 = vshrl.u32 %v680, 7
        %v682 = vadd.s32 %v681, 24
        %683 = vset.pattern.permute.xlu0 %v682
        %684 = vperm.xlu0 %683, %v502
        %v685 = vpop.permute.xlu0 %684
        %v686 = vlaneseq
        %v687 = vshrl.u32 %v686, 7
        %v688 = vadd.s32 %v687, 16
        %689 = vset.pattern.permute.xlu0 %v688
        %690 = vperm.xlu0 %689, %v515
        %v691 = vpop.permute.xlu0 %690
        %v692 = vlaneseq
        %v693 = vshrl.u32 %v692, 7
        %v694 = vadd.s32 %v693, 24
        %695 = vset.pattern.permute.xlu0 %v694
        %696 = vperm.xlu0 %695, %v515
        %v697 = vpop.permute.xlu0 %696
        %v698 = vlaneseq
        %v699 = vshrl.u32 %v698, 7
        %v700 = vadd.s32 %v699, 16
        %701 = vset.pattern.permute.xlu0 %v700
        %702 = vperm.xlu0 %701, %v528
        %v703 = vpop.permute.xlu0 %702
        %v704 = vlaneseq
        %v705 = vshrl.u32 %v704, 7
        %v706 = vadd.s32 %v705, 24
        %707 = vset.pattern.permute.xlu0 %v706
        %708 = vperm.xlu0 %707, %v528
        %v709 = vpop.permute.xlu0 %708
        %v710 = vlaneseq
        %v711 = vshrl.u32 %v710, 7
        %v712 = vadd.s32 %v711, 16
        %713 = vset.pattern.permute.xlu0 %v712
        %714 = vperm.xlu0 %713, %v541
        %v715 = vpop.permute.xlu0 %714
        %v716 = vlaneseq
        %v717 = vshrl.u32 %v716, 7
        %v718 = vadd.s32 %v717, 24
        %719 = vset.pattern.permute.xlu0 %v718
        %720 = vperm.xlu0 %719, %v541
        %v721 = vpop.permute.xlu0 %720
        %v722 = vlaneseq
        %v723 = vshrl.u32 %v722, 7
        %v724 = vadd.s32 %v723, 16
        %725 = vset.pattern.permute.xlu0 %v724
        %726 = vperm.xlu0 %725, %v554
        %v727 = vpop.permute.xlu0 %726
        %v728 = vlaneseq
        %v729 = vshrl.u32 %v728, 7
        %v730 = vadd.s32 %v729, 24
        %731 = vset.pattern.permute.xlu0 %v730
        %732 = vperm.xlu0 %731, %v554
        %v733 = vpop.permute.xlu0 %732
        %v734 = vlaneseq
        %v735 = vshrl.u32 %v734, 7
        %v736 = vadd.s32 %v735, 16
        %737 = vset.pattern.permute.xlu0 %v736
        %738 = vperm.xlu0 %737, %v567
        %v739 = vpop.permute.xlu0 %738
        %v740 = vlaneseq
        %v741 = vshrl.u32 %v740, 7
        %v742 = vadd.s32 %v741, 24
        %743 = vset.pattern.permute.xlu0 %v742
        %744 = vperm.xlu0 %743, %v567
        %v745 = vpop.permute.xlu0 %744
        %v746 = vlaneseq
        %v747 = vshrl.u32 %v746, 7
        %v748 = vadd.s32 %v747, 16
        %749 = vset.pattern.permute.xlu0 %v748
        %750 = vperm.xlu0 %749, %v580
        %v751 = vpop.permute.xlu0 %750
        %v752 = vlaneseq
        %v753 = vshrl.u32 %v752, 7
        %v754 = vadd.s32 %v753, 24
        %755 = vset.pattern.permute.xlu0 %v754
        %756 = vperm.xlu0 %755, %v580
        %v757 = vpop.permute.xlu0 %756
        %v758 = vlaneseq
        %v759 = vshrl.u32 %v758, 7
        %v760 = vadd.s32 %v759, 16
        %761 = vset.pattern.permute.xlu0 %v760
        %762 = vperm.xlu0 %761, %v593
        %v763 = vpop.permute.xlu0 %762
        %v764 = vlaneseq
        %v765 = vshrl.u32 %v764, 7
        %v766 = vadd.s32 %v765, 24
        %767 = vset.pattern.permute.xlu0 %v766
        %768 = vperm.xlu0 %767, %v593
        %v769 = vpop.permute.xlu0 %768
        %v770 = vmul.f32 %v679, %v642
        %v771 = vmul.f32 %v685, %v643
        %v772 = vmul.f32 %v691, %v646
        %v773 = vmul.f32 %v697, %v647
        %v774 = vmul.f32 %v703, %v650
        %v775 = vmul.f32 %v709, %v651
        %v776 = vmul.f32 %v715, %v654
        %v777 = vmul.f32 %v721, %v655
        %v778 = vmul.f32 %v727, %v658
        %v779 = vmul.f32 %v733, %v659
        %v780 = vmul.f32 %v739, %v662
        %v781 = vmul.f32 %v745, %v663
        %v782 = vmul.f32 %v751, %v666
        %v783 = vmul.f32 %v757, %v667
        %v784 = vmul.f32 %v763, %v670
        %v785 = vmul.f32 %v769, %v671
        %v786 = vadd.f32 %v770, %v771
        %v787 = vrot.slane %v786, 4
        %v788 = vadd.f32 %v786, %v787
        %v789 = vrot.slane %v788, 2
        %v790 = vadd.f32 %v788, %v789
        %v791 = vrot.slane %v790, 1
        %v792 = vadd.f32 %v790, %v791
        %v793 = vadd.f32 %v772, %v773
        %v794 = vrot.slane %v793, 4
        %v795 = vadd.f32 %v793, %v794
        %v796 = vrot.slane %v795, 2
        %v797 = vadd.f32 %v795, %v796
        %v798 = vrot.slane %v797, 1
        %v799 = vadd.f32 %v797, %v798
        %v800 = vadd.f32 %v774, %v775
        %v801 = vrot.slane %v800, 4
        %v802 = vadd.f32 %v800, %v801
        %v803 = vrot.slane %v802, 2
        %v804 = vadd.f32 %v802, %v803
        %v805 = vrot.slane %v804, 1
        %v806 = vadd.f32 %v804, %v805
        %v807 = vadd.f32 %v776, %v777
        %v808 = vrot.slane %v807, 4
        %v809 = vadd.f32 %v807, %v808
        %v810 = vrot.slane %v809, 2
        %v811 = vadd.f32 %v809, %v810
        %v812 = vrot.slane %v811, 1
        %v813 = vadd.f32 %v811, %v812
        %v814 = vadd.f32 %v778, %v779
        %v815 = vrot.slane %v814, 4
        %v816 = vadd.f32 %v814, %v815
        %v817 = vrot.slane %v816, 2
        %v818 = vadd.f32 %v816, %v817
        %v819 = vrot.slane %v818, 1
        %v820 = vadd.f32 %v818, %v819
        %v821 = vadd.f32 %v780, %v781
        %v822 = vrot.slane %v821, 4
        %v823 = vadd.f32 %v821, %v822
        %v824 = vrot.slane %v823, 2
        %v825 = vadd.f32 %v823, %v824
        %v826 = vrot.slane %v825, 1
        %v827 = vadd.f32 %v825, %v826
        %v828 = vadd.f32 %v782, %v783
        %v829 = vrot.slane %v828, 4
        %v830 = vadd.f32 %v828, %v829
        %v831 = vrot.slane %v830, 2
        %v832 = vadd.f32 %v830, %v831
        %v833 = vrot.slane %v832, 1
        %v834 = vadd.f32 %v832, %v833
        %v835 = vadd.f32 %v784, %v785
        %v836 = vrot.slane %v835, 4
        %v837 = vadd.f32 %v835, %v836
        %v838 = vrot.slane %v837, 2
        %v839 = vadd.f32 %v837, %v838
        %v840 = vrot.slane %v839, 1
        %v841 = vadd.f32 %v839, %v840
        %v842 = vperm.slane %v390, 0
        %v843 = vmul.f32 %v406, %v842
        %v845 = vrot.slane %v843, 1
        %v846 = vrot.slane %v843, 2
        %v847 = vrot.slane %v843, 3
        %v848 = vrot.slane %v843, 4
        %v849 = vrot.slane %v843, 5
        %v850 = vrot.slane %v843, 6
        %v851 = vrot.slane %v843, 7
        %v860 = vadd.f32 %v792, %v843
        %v861 = vadd.f32 %v799, %v845
        %v862 = vadd.f32 %v806, %v846
        %v863 = vadd.f32 %v813, %v847
        %v864 = vadd.f32 %v820, %v848
        %v865 = vadd.f32 %v827, %v849
        %v866 = vadd.f32 %v834, %v850
        %v867 = vadd.f32 %v841, %v851
        %v876 = vrot.slane %v861, 7
        %vm877 = vcmask 1041409
        %v878 = vsel %vm877, %v876, %v860
        %v879 = vrot.slane %v862, 6
        %vm880 = vcmask 1042434
        %v881 = vsel %vm880, %v879, %v878
        %v882 = vrot.slane %v863, 5
        %vm883 = vcmask 1043459
        %v884 = vsel %vm883, %v882, %v881
        %v885 = vrot.slane %v864, 4
        %vm886 = vcmask 1044484
        %v887 = vsel %vm886, %v885, %v884
        %v888 = vrot.slane %v865, 3
        %vm889 = vcmask 1045509
        %v890 = vsel %vm889, %v888, %v887
        %v891 = vrot.slane %v866, 2
        %vm892 = vcmask 1046534
        %v893 = vsel %vm892, %v891, %v890
        %v894 = vrot.slane %v867, 1
        %vm895 = vcmask 1047559
        %v896 = vsel %vm895, %v894, %v893
        %s898 = scalar_lea.vmem %s386, %s404
        %899 = vst [vmem:[%s898] sm:$0xff] %v896
      $region45: #{ss2d_forward.2} parent=35 // loop_footer
        %s403 = sadd.s32 1, %s399
      $region46: #{ss2d_forward.2} parent=35 // loop_footer_branch
        %398 = sbr.rel target = $region42
      $region47: #{ss2d_forward.2} parent=35 // loop_exit
        _
      %s900 = smul.u32 8, %s22
      %p901 = scmp.lt.s32.totalorder %s20, 1
      %s902 = scalar_select %p901, %s20, 1
      %p903 = scmp.lt.s32.totalorder %s21, 3
      %s904 = scalar_select %p903, %s21, 3
      %p905 = scmp.lt.s32.totalorder %s900, 7
      %s906 = scalar_select %p905, %s900, 7
      %s907 = smul.addr %s904, 8
      %s908 = sadd.s32 %s906, %s907
      %s909 = smul.addr %s902, 32
      %s910 = sadd.s32 %s908, %s909
      %s911 = smul.addr %s910, 8
      %s912 = scalar_lea.vmem %s4, %s911
      // Predicated region
      $region48: #{ss2d_forward.2} parent=35 // pred_check
        %p913 = pneg %p172
      $region49: #{ss2d_forward.2} parent=35 // pred_check_branch
        %915 = sbr.rel (%p913) target = $region51
      $region50: #{ss2d_forward.2} parent=35 // pred_region
        %s916 = smul.u32 8, %s22
      $region51: #{ss2d_forward.2} parent=35 // pred_fallthru
        _
    $region36: #{ss2d_forward.2} parent=5 // pred_fallthru
      _
    %p917 = scmp.le.s32.totalorder 2, %s10
    // Predicated region
    $region52: #{ss2d_forward.2} parent=5 // pred_check
      %p918 = pneg %p917
    $region53: #{ss2d_forward.2} parent=5 // pred_check_branch
      %920 = sbr.rel (%p918) target = $region55
    $region54: #{ss2d_forward.2} parent=5 // pred_region
      %s921 = ssub.s32 %s10, 2
      // Predicated region
      $region56: #{ss2d_forward.2} parent=54 // pred_check
        %p922 = pneg %p178
      $region57: #{ss2d_forward.2} parent=54 // pred_check_branch
        %924 = sbr.rel (%p922) target = $region59
      $region58: #{ss2d_forward.2} parent=54 // pred_region
        %s925 = smul.u32 8, %s25
        %p926 = scmp.lt.s32.totalorder %s23, 1
        %s927 = scalar_select %p926, %s23, 1
        %p928 = scmp.lt.s32.totalorder %s24, 3
        %s929 = scalar_select %p928, %s24, 3
        %p930 = scmp.lt.s32.totalorder %s925, 7
        %s931 = scalar_select %p930, %s925, 7
        %s932 = smul.addr %s929, 8
        %s933 = sadd.s32 %s931, %s932
        %s934 = smul.addr %s927, 32
        %s935 = sadd.s32 %s933, %s934
        %s936 = smul.addr %s935, 8
        %s937 = scalar_lea.vmem %s4, %s936
      $region59: #{ss2d_forward.2} parent=54 // pred_fallthru
        _
    $region55: #{ss2d_forward.2} parent=5 // pred_fallthru
      _
  $region6: #{ss2d_forward.2} parent=0 // loop_footer
    %s14 = sadd.s32 1, %s10
  $region7: #{ss2d_forward.2} parent=0 // loop_footer_branch
    %9 = sbr.rel target = $region3
  $region8: #{ss2d_forward.2} parent=0 // loop_exit
    _

// kernel: ss2d_forward.3
$region0: #{ss2d_forward.3}
  #allocation0 [shape = 'u32[]', space=smem, size = 0x4, offset = 0x4, fixed_abs, tag = 'smem constant byte address 0x4 - core index']
  #allocation1 [shape = 'u32[72,128]{1,0:T(1,128)}', space=vmem, size = 0x9000, scoped, tag = 'internal scratch']
  %s0 = inlined_call_operand.vmem [shape: f32[128,128], index: 0, kind: input, shape index: {}]
  %s1 = inlined_call_operand.vmem [shape: f32[128,128], index: 1, kind: input, shape index: {}]
  %s2 = inlined_call_operand.vmem [shape: f32[2,128], index: 2, kind: input, shape index: {}]
  %s3 = inlined_call_operand.vmem [shape: f32[128,128], index: 3, kind: input, shape index: {}]
  %s4 = inlined_call_operand.hbm [shape: f32[128,128], index: 4, kind: output, shape index: {}]
  %s5 = sld [smem:[#allocation0]]
  $region26: #{ss2d_forward.3} parent=0
    _
  %s7 = ssub.s32 1, %s5
  %s8 = scalar_select 0, %s7, %s5
  $region1: #{ss2d_forward.3} parent=0
    #allocation2 [shape = 'u8[65536]{0}', space=vmem, size = 0x10000, scoped, tag = 'output window, operand 0, single buffered']
    #allocation3 [shape = 's32[1]{0}', space=sflag, size = 0x4, scoped, tag = 'scoped memory for ss2d_forward.3']
    %9 = vsyncpa [#allocation3], 0
    // Predicated region
    $region2: #{ss2d_forward.3} parent=1 // pred_check
      _
    $region3: #{ss2d_forward.3} parent=1 // pred_check_branch
      %11 = sbr.rel (0) target = $region5
    $region4: #{ss2d_forward.3} parent=1 // pred_region
      _
    $region5: #{ss2d_forward.3} parent=1 // pred_fallthru
      _
    // Predicated region
    $region6: #{ss2d_forward.3} parent=1 // pred_check
      _
    $region7: #{ss2d_forward.3} parent=1 // pred_check_branch
      %13 = sbr.rel (0) target = $region9
    $region8: #{ss2d_forward.3} parent=1 // pred_region
      _
    $region9: #{ss2d_forward.3} parent=1 // pred_fallthru
      _
    // Predicated region
    $region10: #{ss2d_forward.3} parent=1 // pred_check
      _
    $region11: #{ss2d_forward.3} parent=1 // pred_check_branch
      %15 = sbr.rel (0) target = $region13
    $region12: #{ss2d_forward.3} parent=1 // pred_region
      _
    $region13: #{ss2d_forward.3} parent=1 // pred_fallthru
      _
    // Predicated region
    $region14: #{ss2d_forward.3} parent=1 // pred_check
      _
    $region15: #{ss2d_forward.3} parent=1 // pred_check_branch
      %17 = sbr.rel (0) target = $region17
    $region16: #{ss2d_forward.3} parent=1 // pred_region
      _
    $region17: #{ss2d_forward.3} parent=1 // pred_fallthru
      _
    %v18 = vld [vmem:[%s0] sm:$0xff]
    %v19 = vld [vmem:[%s0 + $0x8] sm:$0xff]
    %v20 = vld [vmem:[%s0 + $0x10] sm:$0xff]
    %v21 = vld [vmem:[%s0 + $0x18] sm:$0xff]
    %v22 = vld [vmem:[%s0 + $0x20] sm:$0xff]
    %v23 = vld [vmem:[%s0 + $0x28] sm:$0xff]
    %v24 = vld [vmem:[%s0 + $0x30] sm:$0xff]
    %v25 = vld [vmem:[%s0 + $0x38] sm:$0xff]
    %v26 = vld [vmem:[%s0 + $0x40] sm:$0xff]
    %v27 = vld [vmem:[%s0 + $0x48] sm:$0xff]
    %v28 = vld [vmem:[%s0 + $0x50] sm:$0xff]
    %v29 = vld [vmem:[%s0 + $0x58] sm:$0xff]
    %v30 = vld [vmem:[%s0 + $0x60] sm:$0xff]
    %v31 = vld [vmem:[%s0 + $0x68] sm:$0xff]
    %v32 = vld [vmem:[%s0 + $0x70] sm:$0xff]
    %v33 = vld [vmem:[%s0 + $0x78] sm:$0xff]
    %v34 = vld [vmem:[%s2] sm:$0x1]
    %v35 = vld [vmem:[%s2 + $0x1] sm:$0x1]
    %36 = vadd.xlane.f32.xlu0 %v18
    %v37 = vpop.xlane.xlu0 %36
    %38 = vadd.xlane.f32.xlu0 %v19
    %v39 = vpop.xlane.xlu0 %38
    %40 = vadd.xlane.f32.xlu0 %v20
    %v41 = vpop.xlane.xlu0 %40
    %42 = vadd.xlane.f32.xlu0 %v21
    %v43 = vpop.xlane.xlu0 %42
    %44 = vadd.xlane.f32.xlu0 %v22
    %v45 = vpop.xlane.xlu0 %44
    %46 = vadd.xlane.f32.xlu0 %v23
    %v47 = vpop.xlane.xlu0 %46
    %48 = vadd.xlane.f32.xlu0 %v24
    %v49 = vpop.xlane.xlu0 %48
    %50 = vadd.xlane.f32.xlu0 %v25
    %v51 = vpop.xlane.xlu0 %50
    %52 = vadd.xlane.f32.xlu0 %v26
    %v53 = vpop.xlane.xlu0 %52
    %54 = vadd.xlane.f32.xlu0 %v27
    %v55 = vpop.xlane.xlu0 %54
    %56 = vadd.xlane.f32.xlu0 %v28
    %v57 = vpop.xlane.xlu0 %56
    %58 = vadd.xlane.f32.xlu0 %v29
    %v59 = vpop.xlane.xlu0 %58
    %60 = vadd.xlane.f32.xlu0 %v30
    %v61 = vpop.xlane.xlu0 %60
    %62 = vadd.xlane.f32.xlu0 %v31
    %v63 = vpop.xlane.xlu0 %62
    %64 = vadd.xlane.f32.xlu0 %v32
    %v65 = vpop.xlane.xlu0 %64
    %66 = vadd.xlane.f32.xlu0 %v33
    %v67 = vpop.xlane.xlu0 %66
    %v68 = vmul.f32 %v18, %v18
    %v69 = vmul.f32 %v19, %v19
    %v70 = vmul.f32 %v20, %v20
    %v71 = vmul.f32 %v21, %v21
    %v72 = vmul.f32 %v22, %v22
    %v73 = vmul.f32 %v23, %v23
    %v74 = vmul.f32 %v24, %v24
    %v75 = vmul.f32 %v25, %v25
    %v76 = vmul.f32 %v26, %v26
    %v77 = vmul.f32 %v27, %v27
    %v78 = vmul.f32 %v28, %v28
    %v79 = vmul.f32 %v29, %v29
    %v80 = vmul.f32 %v30, %v30
    %v81 = vmul.f32 %v31, %v31
    %v82 = vmul.f32 %v32, %v32
    %v83 = vmul.f32 %v33, %v33
    %84 = vadd.xlane.f32.xlu0 %v68
    %v85 = vpop.xlane.xlu0 %84
    %86 = vadd.xlane.f32.xlu0 %v69
    %v87 = vpop.xlane.xlu0 %86
    %88 = vadd.xlane.f32.xlu0 %v70
    %v89 = vpop.xlane.xlu0 %88
    %90 = vadd.xlane.f32.xlu0 %v71
    %v91 = vpop.xlane.xlu0 %90
    %92 = vadd.xlane.f32.xlu0 %v72
    %v93 = vpop.xlane.xlu0 %92
    %94 = vadd.xlane.f32.xlu0 %v73
    %v95 = vpop.xlane.xlu0 %94
    %96 = vadd.xlane.f32.xlu0 %v74
    %v97 = vpop.xlane.xlu0 %96
    %98 = vadd.xlane.f32.xlu0 %v75
    %v99 = vpop.xlane.xlu0 %98
    %100 = vadd.xlane.f32.xlu0 %v76
    %v101 = vpop.xlane.xlu0 %100
    %102 = vadd.xlane.f32.xlu0 %v77
    %v103 = vpop.xlane.xlu0 %102
    %104 = vadd.xlane.f32.xlu0 %v78
    %v105 = vpop.xlane.xlu0 %104
    %106 = vadd.xlane.f32.xlu0 %v79
    %v107 = vpop.xlane.xlu0 %106
    %108 = vadd.xlane.f32.xlu0 %v80
    %v109 = vpop.xlane.xlu0 %108
    %110 = vadd.xlane.f32.xlu0 %v81
    %v111 = vpop.xlane.xlu0 %110
    %112 = vadd.xlane.f32.xlu0 %v82
    %v113 = vpop.xlane.xlu0 %112
    %114 = vadd.xlane.f32.xlu0 %v83
    %v115 = vpop.xlane.xlu0 %114
    %v116 = vmul.f32 %v37, 0.015625
    %v117 = vmul.f32 %v39, 0.015625
    %v118 = vmul.f32 %v41, 0.015625
    %v119 = vmul.f32 %v43, 0.015625
    %v120 = vmul.f32 %v45, 0.015625
    %v121 = vmul.f32 %v47, 0.015625
    %v122 = vmul.f32 %v49, 0.015625
    %v123 = vmul.f32 %v51, 0.015625
    %v124 = vmul.f32 %v53, 0.015625
    %v125 = vmul.f32 %v55, 0.015625
    %v126 = vmul.f32 %v57, 0.015625
    %v127 = vmul.f32 %v59, 0.015625
    %v128 = vmul.f32 %v61, 0.015625
    %v129 = vmul.f32 %v63, 0.015625
    %v130 = vmul.f32 %v65, 0.015625
    %v131 = vmul.f32 %v67, 0.015625
    %v132 = vmul.f32 %v85, 0.015625
    %v133 = vmul.f32 %v87, 0.015625
    %v134 = vmul.f32 %v89, 0.015625
    %v135 = vmul.f32 %v91, 0.015625
    %v136 = vmul.f32 %v93, 0.015625
    %v137 = vmul.f32 %v95, 0.015625
    %v138 = vmul.f32 %v97, 0.015625
    %v139 = vmul.f32 %v99, 0.015625
    %v140 = vmul.f32 %v101, 0.015625
    %v141 = vmul.f32 %v103, 0.015625
    %v142 = vmul.f32 %v105, 0.015625
    %v143 = vmul.f32 %v107, 0.015625
    %v144 = vmul.f32 %v109, 0.015625
    %v145 = vmul.f32 %v111, 0.015625
    %v146 = vmul.f32 %v113, 0.015625
    %v147 = vmul.f32 %v115, 0.015625
    %v148 = vmul.f32 %v116, %v116
    %v149 = vmul.f32 %v117, %v117
    %v150 = vmul.f32 %v118, %v118
    %v151 = vmul.f32 %v119, %v119
    %v152 = vmul.f32 %v120, %v120
    %v153 = vmul.f32 %v121, %v121
    %v154 = vmul.f32 %v122, %v122
    %v155 = vmul.f32 %v123, %v123
    %v156 = vmul.f32 %v124, %v124
    %v157 = vmul.f32 %v125, %v125
    %v158 = vmul.f32 %v126, %v126
    %v159 = vmul.f32 %v127, %v127
    %v160 = vmul.f32 %v128, %v128
    %v161 = vmul.f32 %v129, %v129
    %v162 = vmul.f32 %v130, %v130
    %v163 = vmul.f32 %v131, %v131
    %v164 = vsub.f32 %v132, %v148
    %v165 = vsub.f32 %v133, %v149
    %v166 = vsub.f32 %v134, %v150
    %v167 = vsub.f32 %v135, %v151
    %v168 = vsub.f32 %v136, %v152
    %v169 = vsub.f32 %v137, %v153
    %v170 = vsub.f32 %v138, %v154
    %v171 = vsub.f32 %v139, %v155
    %v172 = vsub.f32 %v140, %v156
    %v173 = vsub.f32 %v141, %v157
    %v174 = vsub.f32 %v142, %v158
    %v175 = vsub.f32 %v143, %v159
    %v176 = vsub.f32 %v144, %v160
    %v177 = vsub.f32 %v145, %v161
    %v178 = vsub.f32 %v146, %v162
    %v179 = vsub.f32 %v147, %v163
    %v180 = vsub.f32 %v18, %v116
    %v181 = vsub.f32 %v19, %v117
    %v182 = vsub.f32 %v20, %v118
    %v183 = vsub.f32 %v21, %v119
    %v184 = vsub.f32 %v22, %v120
    %v185 = vsub.f32 %v23, %v121
    %v186 = vsub.f32 %v24, %v122
    %v187 = vsub.f32 %v25, %v123
    %v188 = vsub.f32 %v26, %v124
    %v189 = vsub.f32 %v27, %v125
    %v190 = vsub.f32 %v28, %v126
    %v191 = vsub.f32 %v29, %v127
    %v192 = vsub.f32 %v30, %v128
    %v193 = vsub.f32 %v31, %v129
    %v194 = vsub.f32 %v32, %v130
    %v195 = vsub.f32 %v33, %v131
    %v196 = vadd.f32 %v164, 1e-05
    %v197 = vadd.f32 %v165, 1e-05
    %v198 = vadd.f32 %v166, 1e-05
    %v199 = vadd.f32 %v167, 1e-05
    %v200 = vadd.f32 %v168, 1e-05
    %v201 = vadd.f32 %v169, 1e-05
    %v202 = vadd.f32 %v170, 1e-05
    %v203 = vadd.f32 %v171, 1e-05
    %v204 = vadd.f32 %v172, 1e-05
    %v205 = vadd.f32 %v173, 1e-05
    %v206 = vadd.f32 %v174, 1e-05
    %v207 = vadd.f32 %v175, 1e-05
    %v208 = vadd.f32 %v176, 1e-05
    %v209 = vadd.f32 %v177, 1e-05
    %v210 = vadd.f32 %v178, 1e-05
    %v211 = vadd.f32 %v179, 1e-05
    %v212 = vrsqrt.pop %v196
    %v213 = vmul.f32 %v212, %v196
    %v214 = vmul.f32 %v213, %v212
    %v215 = vmul.f32 0.5, %v214
    %v216 = vsub.f32 1.5, %v215
    %v217 = vmul.f32 %v212, %v216
    %vm218 = vweird.f32 %v196
    %vm219 = vweird.f32 %v212
    %vm220 = vmor %vm218, %vm219
    %v221 = vsel %vm220, %v212, %v217
    %v222 = vrsqrt.pop %v197
    %v223 = vmul.f32 %v222, %v197
    %v224 = vmul.f32 %v223, %v222
    %v225 = vmul.f32 0.5, %v224
    %v226 = vsub.f32 1.5, %v225
    %v227 = vmul.f32 %v222, %v226
    %vm228 = vweird.f32 %v197
    %vm229 = vweird.f32 %v222
    %vm230 = vmor %vm228, %vm229
    %v231 = vsel %vm230, %v222, %v227
    %v232 = vrsqrt.pop %v198
    %v233 = vmul.f32 %v232, %v198
    %v234 = vmul.f32 %v233, %v232
    %v235 = vmul.f32 0.5, %v234
    %v236 = vsub.f32 1.5, %v235
    %v237 = vmul.f32 %v232, %v236
    %vm238 = vweird.f32 %v198
    %vm239 = vweird.f32 %v232
    %vm240 = vmor %vm238, %vm239
    %v241 = vsel %vm240, %v232, %v237
    %v242 = vrsqrt.pop %v199
    %v243 = vmul.f32 %v242, %v199
    %v244 = vmul.f32 %v243, %v242
    %v245 = vmul.f32 0.5, %v244
    %v246 = vsub.f32 1.5, %v245
    %v247 = vmul.f32 %v242, %v246
    %vm248 = vweird.f32 %v199
    %vm249 = vweird.f32 %v242
    %vm250 = vmor %vm248, %vm249
    %v251 = vsel %vm250, %v242, %v247
    %v252 = vrsqrt.pop %v200
    %v253 = vmul.f32 %v252, %v200
    %v254 = vmul.f32 %v253, %v252
    %v255 = vmul.f32 0.5, %v254
    %v256 = vsub.f32 1.5, %v255
    %v257 = vmul.f32 %v252, %v256
    %vm258 = vweird.f32 %v200
    %vm259 = vweird.f32 %v252
    %vm260 = vmor %vm258, %vm259
    %v261 = vsel %vm260, %v252, %v257
    %v262 = vrsqrt.pop %v201
    %v263 = vmul.f32 %v262, %v201
    %v264 = vmul.f32 %v263, %v262
    %v265 = vmul.f32 0.5, %v264
    %v266 = vsub.f32 1.5, %v265
    %v267 = vmul.f32 %v262, %v266
    %vm268 = vweird.f32 %v201
    %vm269 = vweird.f32 %v262
    %vm270 = vmor %vm268, %vm269
    %v271 = vsel %vm270, %v262, %v267
    %v272 = vrsqrt.pop %v202
    %v273 = vmul.f32 %v272, %v202
    %v274 = vmul.f32 %v273, %v272
    %v275 = vmul.f32 0.5, %v274
    %v276 = vsub.f32 1.5, %v275
    %v277 = vmul.f32 %v272, %v276
    %vm278 = vweird.f32 %v202
    %vm279 = vweird.f32 %v272
    %vm280 = vmor %vm278, %vm279
    %v281 = vsel %vm280, %v272, %v277
    %v282 = vrsqrt.pop %v203
    %v283 = vmul.f32 %v282, %v203
    %v284 = vmul.f32 %v283, %v282
    %v285 = vmul.f32 0.5, %v284
    %v286 = vsub.f32 1.5, %v285
    %v287 = vmul.f32 %v282, %v286
    %vm288 = vweird.f32 %v203
    %vm289 = vweird.f32 %v282
    %vm290 = vmor %vm288, %vm289
    %v291 = vsel %vm290, %v282, %v287
    %v292 = vrsqrt.pop %v204
    %v293 = vmul.f32 %v292, %v204
    %v294 = vmul.f32 %v293, %v292
    %v295 = vmul.f32 0.5, %v294
    %v296 = vsub.f32 1.5, %v295
    %v297 = vmul.f32 %v292, %v296
    %vm298 = vweird.f32 %v204
    %vm299 = vweird.f32 %v292
    %vm300 = vmor %vm298, %vm299
    %v301 = vsel %vm300, %v292, %v297
    %v302 = vrsqrt.pop %v205
    %v303 = vmul.f32 %v302, %v205
    %v304 = vmul.f32 %v303, %v302
    %v305 = vmul.f32 0.5, %v304
    %v306 = vsub.f32 1.5, %v305
    %v307 = vmul.f32 %v302, %v306
    %vm308 = vweird.f32 %v205
    %vm309 = vweird.f32 %v302
    %vm310 = vmor %vm308, %vm309
    %v311 = vsel %vm310, %v302, %v307
    %v312 = vrsqrt.pop %v206
    %v313 = vmul.f32 %v312, %v206
    %v314 = vmul.f32 %v313, %v312
    %v315 = vmul.f32 0.5, %v314
    %v316 = vsub.f32 1.5, %v315
    %v317 = vmul.f32 %v312, %v316
    %vm318 = vweird.f32 %v206
    %vm319 = vweird.f32 %v312
    %vm320 = vmor %vm318, %vm319
    %v321 = vsel %vm320, %v312, %v317
    %v322 = vrsqrt.pop %v207
    %v323 = vmul.f32 %v322, %v207
    %v324 = vmul.f32 %v323, %v322
    %v325 = vmul.f32 0.5, %v324
    %v326 = vsub.f32 1.5, %v325
    %v327 = vmul.f32 %v322, %v326
    %vm328 = vweird.f32 %v207
    %vm329 = vweird.f32 %v322
    %vm330 = vmor %vm328, %vm329
    %v331 = vsel %vm330, %v322, %v327
    %v332 = vrsqrt.pop %v208
    %v333 = vmul.f32 %v332, %v208
    %v334 = vmul.f32 %v333, %v332
    %v335 = vmul.f32 0.5, %v334
    %v336 = vsub.f32 1.5, %v335
    %v337 = vmul.f32 %v332, %v336
    %vm338 = vweird.f32 %v208
    %vm339 = vweird.f32 %v332
    %vm340 = vmor %vm338, %vm339
    %v341 = vsel %vm340, %v332, %v337
    %v342 = vrsqrt.pop %v209
    %v343 = vmul.f32 %v342, %v209
    %v344 = vmul.f32 %v343, %v342
    %v345 = vmul.f32 0.5, %v344
    %v346 = vsub.f32 1.5, %v345
    %v347 = vmul.f32 %v342, %v346
    %vm348 = vweird.f32 %v209
    %vm349 = vweird.f32 %v342
    %vm350 = vmor %vm348, %vm349
    %v351 = vsel %vm350, %v342, %v347
    %v352 = vrsqrt.pop %v210
    %v353 = vmul.f32 %v352, %v210
    %v354 = vmul.f32 %v353, %v352
    %v355 = vmul.f32 0.5, %v354
    %v356 = vsub.f32 1.5, %v355
    %v357 = vmul.f32 %v352, %v356
    %vm358 = vweird.f32 %v210
    %vm359 = vweird.f32 %v352
    %vm360 = vmor %vm358, %vm359
    %v361 = vsel %vm360, %v352, %v357
    %v362 = vrsqrt.pop %v211
    %v363 = vmul.f32 %v362, %v211
    %v364 = vmul.f32 %v363, %v362
    %v365 = vmul.f32 0.5, %v364
    %v366 = vsub.f32 1.5, %v365
    %v367 = vmul.f32 %v362, %v366
    %vm368 = vweird.f32 %v211
    %vm369 = vweird.f32 %v362
    %vm370 = vmor %vm368, %vm369
    %v371 = vsel %vm370, %v362, %v367
    %v372 = vmul.f32 %v180, %v221
    %v373 = vmul.f32 %v181, %v231
    %v374 = vmul.f32 %v182, %v241
    %v375 = vmul.f32 %v183, %v251
    %v376 = vmul.f32 %v184, %v261
    %v377 = vmul.f32 %v185, %v271
    %v378 = vmul.f32 %v186, %v281
    %v379 = vmul.f32 %v187, %v291
    %v380 = vmul.f32 %v188, %v301
    %v381 = vmul.f32 %v189, %v311
    %v382 = vmul.f32 %v190, %v321
    %v383 = vmul.f32 %v191, %v331
    %v384 = vmul.f32 %v192, %v341
    %v385 = vmul.f32 %v193, %v351
    %v386 = vmul.f32 %v194, %v361
    %v387 = vmul.f32 %v195, %v371
    %v388 = vperm.slane %v34, 0
    %v389 = vmul.f32 %v372, %v388
    %v390 = vmul.f32 %v373, %v388
    %v391 = vmul.f32 %v374, %v388
    %v392 = vmul.f32 %v375, %v388
    %v393 = vmul.f32 %v376, %v388
    %v394 = vmul.f32 %v377, %v388
    %v395 = vmul.f32 %v378, %v388
    %v396 = vmul.f32 %v379, %v388
    %v397 = vmul.f32 %v380, %v388
    %v398 = vmul.f32 %v381, %v388
    %v399 = vmul.f32 %v382, %v388
    %v400 = vmul.f32 %v383, %v388
    %v401 = vmul.f32 %v384, %v388
    %v402 = vmul.f32 %v385, %v388
    %v403 = vmul.f32 %v386, %v388
    %v404 = vmul.f32 %v387, %v388
    %v405 = vperm.slane %v35, 0
    %v406 = vadd.f32 %v389, %v405
    %v407 = vadd.f32 %v390, %v405
    %v408 = vadd.f32 %v391, %v405
    %v409 = vadd.f32 %v392, %v405
    %v410 = vadd.f32 %v393, %v405
    %v411 = vadd.f32 %v394, %v405
    %v412 = vadd.f32 %v395, %v405
    %v413 = vadd.f32 %v396, %v405
    %v414 = vadd.f32 %v397, %v405
    %v415 = vadd.f32 %v398, %v405
    %v416 = vadd.f32 %v399, %v405
    %v417 = vadd.f32 %v400, %v405
    %v418 = vadd.f32 %v401, %v405
    %v419 = vadd.f32 %v402, %v405
    %v420 = vadd.f32 %v403, %v405
    %v421 = vadd.f32 %v404, %v405
    %v422 = vld [vmem:[%s1] sm:$0xff]
    %v423 = vld [vmem:[%s1 + $0x8] sm:$0xff]
    %v424 = vld [vmem:[%s1 + $0x10] sm:$0xff]
    %v425 = vld [vmem:[%s1 + $0x18] sm:$0xff]
    %v426 = vld [vmem:[%s1 + $0x20] sm:$0xff]
    %v427 = vld [vmem:[%s1 + $0x28] sm:$0xff]
    %v428 = vld [vmem:[%s1 + $0x30] sm:$0xff]
    %v429 = vld [vmem:[%s1 + $0x38] sm:$0xff]
    %v430 = vld [vmem:[%s1 + $0x40] sm:$0xff]
    %v431 = vld [vmem:[%s1 + $0x48] sm:$0xff]
    %v432 = vld [vmem:[%s1 + $0x50] sm:$0xff]
    %v433 = vld [vmem:[%s1 + $0x58] sm:$0xff]
    %v434 = vld [vmem:[%s1 + $0x60] sm:$0xff]
    %v435 = vld [vmem:[%s1 + $0x68] sm:$0xff]
    %v436 = vld [vmem:[%s1 + $0x70] sm:$0xff]
    %v437 = vld [vmem:[%s1 + $0x78] sm:$0xff]
    %v438 = vsub.f32 0.0, %v422
    %v439 = vsub.f32 0.0, %v423
    %v440 = vsub.f32 0.0, %v424
    %v441 = vsub.f32 0.0, %v425
    %v442 = vsub.f32 0.0, %v426
    %v443 = vsub.f32 0.0, %v427
    %v444 = vsub.f32 0.0, %v428
    %v445 = vsub.f32 0.0, %v429
    %v446 = vsub.f32 0.0, %v430
    %v447 = vsub.f32 0.0, %v431
    %v448 = vsub.f32 0.0, %v432
    %v449 = vsub.f32 0.0, %v433
    %v450 = vsub.f32 0.0, %v434
    %v451 = vsub.f32 0.0, %v435
    %v452 = vsub.f32 0.0, %v436
    %v453 = vsub.f32 0.0, %v437
    %v454 = vmul.f32 %v438, 1.442695
    %v455 = vpow.pop %v454
    %v456 = vmul.f32 %v439, 1.442695
    %v457 = vpow.pop %v456
    %v458 = vmul.f32 %v440, 1.442695
    %v459 = vpow.pop %v458
    %v460 = vmul.f32 %v441, 1.442695
    %v461 = vpow.pop %v460
    %v462 = vmul.f32 %v442, 1.442695
    %v463 = vpow.pop %v462
    %v464 = vmul.f32 %v443, 1.442695
    %v465 = vpow.pop %v464
    %v466 = vmul.f32 %v444, 1.442695
    %v467 = vpow.pop %v466
    %v468 = vmul.f32 %v445, 1.442695
    %v469 = vpow.pop %v468
    %v470 = vmul.f32 %v446, 1.442695
    %v471 = vpow.pop %v470
    %v472 = vmul.f32 %v447, 1.442695
    %v473 = vpow.pop %v472
    %v474 = vmul.f32 %v448, 1.442695
    %v475 = vpow.pop %v474
    %v476 = vmul.f32 %v449, 1.442695
    %v477 = vpow.pop %v476
    %v478 = vmul.f32 %v450, 1.442695
    %v479 = vpow.pop %v478
    %v480 = vmul.f32 %v451, 1.442695
    %v481 = vpow.pop %v480
    %v482 = vmul.f32 %v452, 1.442695
    %v483 = vpow.pop %v482
    %v484 = vmul.f32 %v453, 1.442695
    %v485 = vpow.pop %v484
    %v486 = vadd.f32 %v455, 1.0
    %v487 = vadd.f32 %v457, 1.0
    %v488 = vadd.f32 %v459, 1.0
    %v489 = vadd.f32 %v461, 1.0
    %v490 = vadd.f32 %v463, 1.0
    %v491 = vadd.f32 %v465, 1.0
    %v492 = vadd.f32 %v467, 1.0
    %v493 = vadd.f32 %v469, 1.0
    %v494 = vadd.f32 %v471, 1.0
    %v495 = vadd.f32 %v473, 1.0
    %v496 = vadd.f32 %v475, 1.0
    %v497 = vadd.f32 %v477, 1.0
    %v498 = vadd.f32 %v479, 1.0
    %v499 = vadd.f32 %v481, 1.0
    %v500 = vadd.f32 %v483, 1.0
    %v501 = vadd.f32 %v485, 1.0
    %v502 = vrcp.pop %v486
    %v503 = vmul.f32 %v486, %v502
    %v504 = vsub.f32 1.0, %v503
    %v505 = vmul.f32 %v502, %v504
    %v506 = vadd.f32 %v502, %v505
    %vm507 = vweird.f32 %v486
    %vm508 = vweird.f32 %v502
    %vm509 = vmor %vm507, %vm508
    %v510 = vsel %vm509, %v502, %v506
    %v511 = vand.u32 2147483647, %v486
    %vm512 = vcmp.eq.f32.partialorder %v511, 8.507059e+37
    %v513 = vand.u32 %v486, 2147483648
    %v514 = vor.u32 1.1754944e-38, %v513
    %v515 = vsel %vm512, %v514, %v510
    %v516 = vmul.f32 1.0, %v515
    %v517 = vrcp.pop %v487
    %v518 = vmul.f32 %v487, %v517
    %v519 = vsub.f32 1.0, %v518
    %v520 = vmul.f32 %v517, %v519
    %v521 = vadd.f32 %v517, %v520
    %vm522 = vweird.f32 %v487
    %vm523 = vweird.f32 %v517
    %vm524 = vmor %vm522, %vm523
    %v525 = vsel %vm524, %v517, %v521
    %v526 = vand.u32 2147483647, %v487
    %vm527 = vcmp.eq.f32.partialorder %v526, 8.507059e+37
    %v528 = vand.u32 %v487, 2147483648
    %v529 = vor.u32 1.1754944e-38, %v528
    %v530 = vsel %vm527, %v529, %v525
    %v531 = vmul.f32 1.0, %v530
    %v532 = vrcp.pop %v488
    %v533 = vmul.f32 %v488, %v532
    %v534 = vsub.f32 1.0, %v533
    %v535 = vmul.f32 %v532, %v534
    %v536 = vadd.f32 %v532, %v535
    %vm537 = vweird.f32 %v488
    %vm538 = vweird.f32 %v532
    %vm539 = vmor %vm537, %vm538
    %v540 = vsel %vm539, %v532, %v536
    %v541 = vand.u32 2147483647, %v488
    %vm542 = vcmp.eq.f32.partialorder %v541, 8.507059e+37
    %v543 = vand.u32 %v488, 2147483648
    %v544 = vor.u32 1.1754944e-38, %v543
    %v545 = vsel %vm542, %v544, %v540
    %v546 = vmul.f32 1.0, %v545
    %v547 = vrcp.pop %v489
    %v548 = vmul.f32 %v489, %v547
    %v549 = vsub.f32 1.0, %v548
    %v550 = vmul.f32 %v547, %v549
    %v551 = vadd.f32 %v547, %v550
    %vm552 = vweird.f32 %v489
    %vm553 = vweird.f32 %v547
    %vm554 = vmor %vm552, %vm553
    %v555 = vsel %vm554, %v547, %v551
    %v556 = vand.u32 2147483647, %v489
    %vm557 = vcmp.eq.f32.partialorder %v556, 8.507059e+37
    %v558 = vand.u32 %v489, 2147483648
    %v559 = vor.u32 1.1754944e-38, %v558
    %v560 = vsel %vm557, %v559, %v555
    %v561 = vmul.f32 1.0, %v560
    %v562 = vrcp.pop %v490
    %v563 = vmul.f32 %v490, %v562
    %v564 = vsub.f32 1.0, %v563
    %v565 = vmul.f32 %v562, %v564
    %v566 = vadd.f32 %v562, %v565
    %vm567 = vweird.f32 %v490
    %vm568 = vweird.f32 %v562
    %vm569 = vmor %vm567, %vm568
    %v570 = vsel %vm569, %v562, %v566
    %v571 = vand.u32 2147483647, %v490
    %vm572 = vcmp.eq.f32.partialorder %v571, 8.507059e+37
    %v573 = vand.u32 %v490, 2147483648
    %v574 = vor.u32 1.1754944e-38, %v573
    %v575 = vsel %vm572, %v574, %v570
    %v576 = vmul.f32 1.0, %v575
    %v577 = vrcp.pop %v491
    %v578 = vmul.f32 %v491, %v577
    %v579 = vsub.f32 1.0, %v578
    %v580 = vmul.f32 %v577, %v579
    %v581 = vadd.f32 %v577, %v580
    %vm582 = vweird.f32 %v491
    %vm583 = vweird.f32 %v577
    %vm584 = vmor %vm582, %vm583
    %v585 = vsel %vm584, %v577, %v581
    %v586 = vand.u32 2147483647, %v491
    %vm587 = vcmp.eq.f32.partialorder %v586, 8.507059e+37
    %v588 = vand.u32 %v491, 2147483648
    %v589 = vor.u32 1.1754944e-38, %v588
    %v590 = vsel %vm587, %v589, %v585
    %v591 = vmul.f32 1.0, %v590
    %v592 = vrcp.pop %v492
    %v593 = vmul.f32 %v492, %v592
    %v594 = vsub.f32 1.0, %v593
    %v595 = vmul.f32 %v592, %v594
    %v596 = vadd.f32 %v592, %v595
    %vm597 = vweird.f32 %v492
    %vm598 = vweird.f32 %v592
    %vm599 = vmor %vm597, %vm598
    %v600 = vsel %vm599, %v592, %v596
    %v601 = vand.u32 2147483647, %v492
    %vm602 = vcmp.eq.f32.partialorder %v601, 8.507059e+37
    %v603 = vand.u32 %v492, 2147483648
    %v604 = vor.u32 1.1754944e-38, %v603
    %v605 = vsel %vm602, %v604, %v600
    %v606 = vmul.f32 1.0, %v605
    %v607 = vrcp.pop %v493
    %v608 = vmul.f32 %v493, %v607
    %v609 = vsub.f32 1.0, %v608
    %v610 = vmul.f32 %v607, %v609
    %v611 = vadd.f32 %v607, %v610
    %vm612 = vweird.f32 %v493
    %vm613 = vweird.f32 %v607
    %vm614 = vmor %vm612, %vm613
    %v615 = vsel %vm614, %v607, %v611
    %v616 = vand.u32 2147483647, %v493
    %vm617 = vcmp.eq.f32.partialorder %v616, 8.507059e+37
    %v618 = vand.u32 %v493, 2147483648
    %v619 = vor.u32 1.1754944e-38, %v618
    %v620 = vsel %vm617, %v619, %v615
    %v621 = vmul.f32 1.0, %v620
    %v622 = vrcp.pop %v494
    %v623 = vmul.f32 %v494, %v622
    %v624 = vsub.f32 1.0, %v623
    %v625 = vmul.f32 %v622, %v624
    %v626 = vadd.f32 %v622, %v625
    %vm627 = vweird.f32 %v494
    %vm628 = vweird.f32 %v622
    %vm629 = vmor %vm627, %vm628
    %v630 = vsel %vm629, %v622, %v626
    %v631 = vand.u32 2147483647, %v494
    %vm632 = vcmp.eq.f32.partialorder %v631, 8.507059e+37
    %v633 = vand.u32 %v494, 2147483648
    %v634 = vor.u32 1.1754944e-38, %v633
    %v635 = vsel %vm632, %v634, %v630
    %v636 = vmul.f32 1.0, %v635
    %v637 = vrcp.pop %v495
    %v638 = vmul.f32 %v495, %v637
    %v639 = vsub.f32 1.0, %v638
    %v640 = vmul.f32 %v637, %v639
    %v641 = vadd.f32 %v637, %v640
    %vm642 = vweird.f32 %v495
    %vm643 = vweird.f32 %v637
    %vm644 = vmor %vm642, %vm643
    %v645 = vsel %vm644, %v637, %v641
    %v646 = vand.u32 2147483647, %v495
    %vm647 = vcmp.eq.f32.partialorder %v646, 8.507059e+37
    %v648 = vand.u32 %v495, 2147483648
    %v649 = vor.u32 1.1754944e-38, %v648
    %v650 = vsel %vm647, %v649, %v645
    %v651 = vmul.f32 1.0, %v650
    %v652 = vrcp.pop %v496
    %v653 = vmul.f32 %v496, %v652
    %v654 = vsub.f32 1.0, %v653
    %v655 = vmul.f32 %v652, %v654
    %v656 = vadd.f32 %v652, %v655
    %vm657 = vweird.f32 %v496
    %vm658 = vweird.f32 %v652
    %vm659 = vmor %vm657, %vm658
    %v660 = vsel %vm659, %v652, %v656
    %v661 = vand.u32 2147483647, %v496
    %vm662 = vcmp.eq.f32.partialorder %v661, 8.507059e+37
    %v663 = vand.u32 %v496, 2147483648
    %v664 = vor.u32 1.1754944e-38, %v663
    %v665 = vsel %vm662, %v664, %v660
    %v666 = vmul.f32 1.0, %v665
    %v667 = vrcp.pop %v497
    %v668 = vmul.f32 %v497, %v667
    %v669 = vsub.f32 1.0, %v668
    %v670 = vmul.f32 %v667, %v669
    %v671 = vadd.f32 %v667, %v670
    %vm672 = vweird.f32 %v497
    %vm673 = vweird.f32 %v667
    %vm674 = vmor %vm672, %vm673
    %v675 = vsel %vm674, %v667, %v671
    %v676 = vand.u32 2147483647, %v497
    %vm677 = vcmp.eq.f32.partialorder %v676, 8.507059e+37
    %v678 = vand.u32 %v497, 2147483648
    %v679 = vor.u32 1.1754944e-38, %v678
    %v680 = vsel %vm677, %v679, %v675
    %v681 = vmul.f32 1.0, %v680
    %v682 = vrcp.pop %v498
    %v683 = vmul.f32 %v498, %v682
    %v684 = vsub.f32 1.0, %v683
    %v685 = vmul.f32 %v682, %v684
    %v686 = vadd.f32 %v682, %v685
    %vm687 = vweird.f32 %v498
    %vm688 = vweird.f32 %v682
    %vm689 = vmor %vm687, %vm688
    %v690 = vsel %vm689, %v682, %v686
    %v691 = vand.u32 2147483647, %v498
    %vm692 = vcmp.eq.f32.partialorder %v691, 8.507059e+37
    %v693 = vand.u32 %v498, 2147483648
    %v694 = vor.u32 1.1754944e-38, %v693
    %v695 = vsel %vm692, %v694, %v690
    %v696 = vmul.f32 1.0, %v695
    %v697 = vrcp.pop %v499
    %v698 = vmul.f32 %v499, %v697
    %v699 = vsub.f32 1.0, %v698
    %v700 = vmul.f32 %v697, %v699
    %v701 = vadd.f32 %v697, %v700
    %vm702 = vweird.f32 %v499
    %vm703 = vweird.f32 %v697
    %vm704 = vmor %vm702, %vm703
    %v705 = vsel %vm704, %v697, %v701
    %v706 = vand.u32 2147483647, %v499
    %vm707 = vcmp.eq.f32.partialorder %v706, 8.507059e+37
    %v708 = vand.u32 %v499, 2147483648
    %v709 = vor.u32 1.1754944e-38, %v708
    %v710 = vsel %vm707, %v709, %v705
    %v711 = vmul.f32 1.0, %v710
    %v712 = vrcp.pop %v500
    %v713 = vmul.f32 %v500, %v712
    %v714 = vsub.f32 1.0, %v713
    %v715 = vmul.f32 %v712, %v714
    %v716 = vadd.f32 %v712, %v715
    %vm717 = vweird.f32 %v500
    %vm718 = vweird.f32 %v712
    %vm719 = vmor %vm717, %vm718
    %v720 = vsel %vm719, %v712, %v716
    %v721 = vand.u32 2147483647, %v500
    %vm722 = vcmp.eq.f32.partialorder %v721, 8.507059e+37
    %v723 = vand.u32 %v500, 2147483648
    %v724 = vor.u32 1.1754944e-38, %v723
    %v725 = vsel %vm722, %v724, %v720
    %v726 = vmul.f32 1.0, %v725
    %v727 = vrcp.pop %v501
    %v728 = vmul.f32 %v501, %v727
    %v729 = vsub.f32 1.0, %v728
    %v730 = vmul.f32 %v727, %v729
    %v731 = vadd.f32 %v727, %v730
    %vm732 = vweird.f32 %v501
    %vm733 = vweird.f32 %v727
    %vm734 = vmor %vm732, %vm733
    %v735 = vsel %vm734, %v727, %v731
    %v736 = vand.u32 2147483647, %v501
    %vm737 = vcmp.eq.f32.partialorder %v736, 8.507059e+37
    %v738 = vand.u32 %v501, 2147483648
    %v739 = vor.u32 1.1754944e-38, %v738
    %v740 = vsel %vm737, %v739, %v735
    %v741 = vmul.f32 1.0, %v740
    %v742 = vmul.f32 %v422, %v516
    %v743 = vmul.f32 %v423, %v531
    %v744 = vmul.f32 %v424, %v546
    %v745 = vmul.f32 %v425, %v561
    %v746 = vmul.f32 %v426, %v576
    %v747 = vmul.f32 %v427, %v591
    %v748 = vmul.f32 %v428, %v606
    %v749 = vmul.f32 %v429, %v621
    %v750 = vmul.f32 %v430, %v636
    %v751 = vmul.f32 %v431, %v651
    %v752 = vmul.f32 %v432, %v666
    %v753 = vmul.f32 %v433, %v681
    %v754 = vmul.f32 %v434, %v696
    %v755 = vmul.f32 %v435, %v711
    %v756 = vmul.f32 %v436, %v726
    %v757 = vmul.f32 %v437, %v741
    %v758 = vmul.f32 %v406, %v742
    %v759 = vmul.f32 %v407, %v743
    %v760 = vmul.f32 %v408, %v744
    %v761 = vmul.f32 %v409, %v745
    %v762 = vmul.f32 %v410, %v746
    %v763 = vmul.f32 %v411, %v747
    %v764 = vmul.f32 %v412, %v748
    %v765 = vmul.f32 %v413, %v749
    %v766 = vmul.f32 %v414, %v750
    %v767 = vmul.f32 %v415, %v751
    %v768 = vmul.f32 %v416, %v752
    %v769 = vmul.f32 %v417, %v753
    %v770 = vmul.f32 %v418, %v754
    %v771 = vmul.f32 %v419, %v755
    %v772 = vmul.f32 %v420, %v756
    %v773 = vmul.f32 %v421, %v757
    %v774 = vld [vmem:[%s3] sm:$0xff]
    %v775 = vld [vmem:[%s3 + $0x8] sm:$0xff]
    %v776 = vld [vmem:[%s3 + $0x10] sm:$0xff]
    %v777 = vld [vmem:[%s3 + $0x18] sm:$0xff]
    %v778 = vld [vmem:[%s3 + $0x20] sm:$0xff]
    %v779 = vld [vmem:[%s3 + $0x28] sm:$0xff]
    %v780 = vld [vmem:[%s3 + $0x30] sm:$0xff]
    %v781 = vld [vmem:[%s3 + $0x38] sm:$0xff]
    %v782 = vld [vmem:[%s3 + $0x40] sm:$0xff]
    %v783 = vld [vmem:[%s3 + $0x48] sm:$0xff]
    %v784 = vld [vmem:[%s3 + $0x50] sm:$0xff]
    %v785 = vld [vmem:[%s3 + $0x58] sm:$0xff]
    %v786 = vld [vmem:[%s3 + $0x60] sm:$0xff]
    %v787 = vld [vmem:[%s3 + $0x68] sm:$0xff]
    %v788 = vld [vmem:[%s3 + $0x70] sm:$0xff]
    %v789 = vld [vmem:[%s3 + $0x78] sm:$0xff]
    %790 = vmatpush.msra.mxu0 %v789
    %791 = vmatpush.msra.mxu0 %v788
    %792 = vmatpush.msra.mxu0 %v787
    %793 = vmatpush.msra.mxu0 %v786
    %794 = vmatpush.msra.mxu0 %v785
    %795 = vmatpush.msra.mxu0 %v784
    %796 = vmatpush.msra.mxu0 %v783
    %797 = vmatpush.msra.mxu0 %v782
    %798 = vmatpush.msra.mxu0 %v781
    %799 = vmatpush.msra.mxu0 %v780
    %800 = vmatpush.msra.mxu0 %v779
    %801 = vmatpush.msra.mxu0 %v778
    %802 = vmatpush.msra.mxu0 %v777
    %803 = vmatpush.msra.mxu0 %v776
    %804 = vmatpush.msra.mxu0 %v775
    %805 = vmatpush.msra.mxu0 %v774
    %806 = vmatmul.f32.gmra.mxu0 %v758
    %v807 = vpop.f32.mrf.mxu0
    %v808 = vadd.f32 0.0, %v807
    %809 = vmatmul.f32.gmra.mxu0 %v759
    %v810 = vpop.f32.mrf.mxu0
    %v811 = vadd.f32 0.0, %v810
    %812 = vmatmul.f32.gmra.mxu0 %v760
    %v813 = vpop.f32.mrf.mxu0
    %v814 = vadd.f32 0.0, %v813
    %815 = vmatmul.f32.gmra.mxu0 %v761
    %v816 = vpop.f32.mrf.mxu0
    %v817 = vadd.f32 0.0, %v816
    %818 = vmatmul.f32.gmra.mxu0 %v762
    %v819 = vpop.f32.mrf.mxu0
    %v820 = vadd.f32 0.0, %v819
    %821 = vmatmul.f32.gmra.mxu0 %v763
    %v822 = vpop.f32.mrf.mxu0
    %v823 = vadd.f32 0.0, %v822
    %824 = vmatmul.f32.gmra.mxu0 %v764
    %v825 = vpop.f32.mrf.mxu0
    %v826 = vadd.f32 0.0, %v825
    %827 = vmatmul.f32.gmra.mxu0 %v765
    %v828 = vpop.f32.mrf.mxu0
    %v829 = vadd.f32 0.0, %v828
    %830 = vmatmul.f32.gmra.mxu0 %v766
    %v831 = vpop.f32.mrf.mxu0
    %v832 = vadd.f32 0.0, %v831
    %833 = vmatmul.f32.gmra.mxu0 %v767
    %v834 = vpop.f32.mrf.mxu0
    %v835 = vadd.f32 0.0, %v834
    %836 = vmatmul.f32.gmra.mxu0 %v768
    %v837 = vpop.f32.mrf.mxu0
    %v838 = vadd.f32 0.0, %v837
    %839 = vmatmul.f32.gmra.mxu0 %v769
    %v840 = vpop.f32.mrf.mxu0
    %v841 = vadd.f32 0.0, %v840
    %842 = vmatmul.f32.gmra.mxu0 %v770
    %v843 = vpop.f32.mrf.mxu0
    %v844 = vadd.f32 0.0, %v843
    %845 = vmatmul.f32.gmra.mxu0 %v771
    %v846 = vpop.f32.mrf.mxu0
    %v847 = vadd.f32 0.0, %v846
    %848 = vmatmul.f32.gmra.mxu0 %v772
    %v849 = vpop.f32.mrf.mxu0
    %v850 = vadd.f32 0.0, %v849
    %851 = vmatmul.f32.gmra.mxu0 %v773
    %v852 = vpop.f32.mrf.mxu0
    %v853 = vadd.f32 0.0, %v852
    %854 = vdwg.mxu0
    %855 = vst [vmem:[#allocation2] sm:$0xff] %v808
    %856 = vst [vmem:[#allocation2 + $0x8] sm:$0xff] %v811
    %857 = vst [vmem:[#allocation2 + $0x10] sm:$0xff] %v814
    %858 = vst [vmem:[#allocation2 + $0x18] sm:$0xff] %v817
    %859 = vst [vmem:[#allocation2 + $0x20] sm:$0xff] %v820
    %860 = vst [vmem:[#allocation2 + $0x28] sm:$0xff] %v823
    %861 = vst [vmem:[#allocation2 + $0x30] sm:$0xff] %v826
    %862 = vst [vmem:[#allocation2 + $0x38] sm:$0xff] %v829
    %863 = vst [vmem:[#allocation2 + $0x40] sm:$0xff] %v832
    %864 = vst [vmem:[#allocation2 + $0x48] sm:$0xff] %v835
    %865 = vst [vmem:[#allocation2 + $0x50] sm:$0xff] %v838
    %866 = vst [vmem:[#allocation2 + $0x58] sm:$0xff] %v841
    %867 = vst [vmem:[#allocation2 + $0x60] sm:$0xff] %v844
    %868 = vst [vmem:[#allocation2 + $0x68] sm:$0xff] %v847
    %869 = vst [vmem:[#allocation2 + $0x70] sm:$0xff] %v850
    %870 = vst [vmem:[#allocation2 + $0x78] sm:$0xff] %v853
    // Predicated region
    $region18: #{ss2d_forward.3} parent=1 // pred_check
      _
    $region19: #{ss2d_forward.3} parent=1 // pred_check_branch
      %872 = sbr.rel (0) target = $region21
    $region20: #{ss2d_forward.3} parent=1 // pred_region
      %874 = vsyncadd [#allocation3], 0
      %s875 = sshll.u32 [#allocation2], 4
      %s876 = int_to_ptr.vmem [resolvable:$true] %s875
      %s877 = sshll.u32 %s4, 4
      %s878 = int_to_ptr.hbm [resolvable:$true] %s877
      %883 = dma.vmem_to_hbm [thread:$0]  %s876, 2048, %s878, [#allocation3], 128, 128, 8
    $region21: #{ss2d_forward.3} parent=1 // pred_fallthru
      _
    // Predicated region
    $region22: #{ss2d_forward.3} parent=1 // pred_check
      _
    $region23: #{ss2d_forward.3} parent=1 // pred_check_branch
      %885 = sbr.rel (0) target = $region25
    $region24: #{ss2d_forward.3} parent=1 // pred_region
      %887 = dma.done [#allocation3], 2048
    $region25: #{ss2d_forward.3} parent=1 // pred_fallthru
      _
    %888 = vsyncpa [#allocation3], 1

</llo_original>
